<compile_context>
chip_gen: v7x
topology: tpu7x:2x2x1
jax: 0.10.0
libtpu: 0.0.40
codegen_flags: <defaults>
</compile_context>

<pallas_src>
import jax
import jax.numpy as jnp
from jax.experimental import pallas as pl
from jax.experimental.pallas import tpu as pltpu  # noqa: F401


def temporal_embedding_kernel(td_ref, tab_ref, out_ref):
    # td_ref:  (2, L)    f32 — row 0 = time-of-day, row 1 = day-of-week,
    #                          L = B*N*T lanes ordered (b, n, t)  (384 = 3x128, dense)
    # tab_ref: (F, K)    f32 — [time_day | time_week] transposed, K = TIME + 7
    # out_ref: (B, F, R) f32 — per-batch (F, N*T) slabs, already in (B,F,N,T) layout
    _, K = tab_ref.shape
    B, _, R = out_ref.shape
    L = B * R
    TIME = K - 7

    tod = td_ref[0:1, :]                                               # (1, L)
    dow = td_ref[1:2, :]                                               # (1, L)

    # Truncating cast == torch .long() for non-negative inputs; clamp pins boundary
    # cases to the valid table range (matches jnp.take clipping semantics).
    day_idx = jnp.clip((tod * TIME).astype(jnp.int32), 0, TIME - 1)    # (1, L)
    week_idx = jnp.clip(dow.astype(jnp.int32), 0, 6) + TIME            # (1, L)

    # One "two-hot" selector for the WHOLE batch: row k is 1 where k == day_idx[l]
    # or k == week_idx[l] (the two index ranges are disjoint, so no collision).
    k_iota = jax.lax.broadcasted_iota(jnp.int32, (K, L), 0)            # (K, L)
    twohot = jnp.logical_or(k_iota == day_idx,
                            k_iota == week_idx).astype(jnp.float32)    # (K, L)

    # Single MXU matmul performs both gathers AND the add for all batches at once.
    res = jnp.dot(tab_ref[...], twohot,
                  preferred_element_type=jnp.float32,
                  precision=jax.lax.Precision.HIGHEST)                 # (F, L)

    # Per-batch stores land the result directly in (B, F, N, T) memory order.
    for b in range(B):                                  # B is tiny & static: unrolled
        out_ref[b, :, :] = res[:, b * R:(b + 1) * R]


@jax.jit
def temporal_embedding(x, time_day, time_week):
    """x: (B, T, N, C) float32. Returns (B, F, N, T) float32."""
    B, T, N, C = x.shape
    TIME, F = time_day.shape
    K = TIME + 7
    R = N * T
    L = B * R

    # ONE small fused prep HLO: pull channels 1..2 and lay lanes out in (b, n, t)
    # order so the kernel's column axis already matches the output memory layout.
    td = jnp.transpose(x[..., 1:3], (3, 0, 2, 1)).reshape(2, L)        # (2, B*N*T)

    # Parameter prep (done once / cached in a real model): fused gather table.
    tab = jnp.concatenate([time_day, time_week], axis=0).T             # (F, K)

    # No grid: one invocation, whole (tiny) arrays as VMEM-resident blocks.
    out = pl.pallas_call(
        temporal_embedding_kernel,
        out_shape=jax.ShapeDtypeStruct((B, F, R), jnp.float32),
    )(td, tab)

    # (B, F, N*T) -> (B, F, N, T): contiguous reshape, no data movement.
    return out.reshape(B, F, N, T)


def _reference(x, time_day, time_week):
    TIME = time_day.shape[0]
    day_idx = (x[..., 1] * TIME).astype(jnp.int32)       # (B, T, N)
    week_idx = x[..., 2].astype(jnp.int32)               # (B, T, N)
    td = jnp.take(time_day, day_idx, axis=0)             # (B, T, N, F)
    tw = jnp.take(time_week, week_idx, axis=0)           # (B, T, N, F)
    emb = td + tw                                        # (B, T, N, F)
    return jnp.transpose(emb, (0, 3, 2, 1))              # (B, F, N, T)


if __name__ == "__main__":
    B, T, N, C = 2, 12, 16, 3
    TIME, FEATURES = 48, 32

    key = jax.random.PRNGKey(0)
    k1, k2, k3, k4, k5 = jax.random.split(key, 5)

    # Deterministic xavier_uniform-style init (same bounds as nn.init.xavier_uniform_)
    bound_day = (6.0 / (TIME + FEATURES)) ** 0.5
    time_day = jax.random.uniform(k1, (TIME, FEATURES), jnp.float32,
                                  minval=-bound_day, maxval=bound_day)
    bound_week = (6.0 / (7 + FEATURES)) ** 0.5
    time_week = jax.random.uniform(k2, (7, FEATURES), jnp.float32,
                                   minval=-bound_week, maxval=bound_week)

    # Input: channel 0 = arbitrary signal, channel 1 = time-of-day in [0,1),
    # channel 2 = day-of-week in {0,...,6} stored as float.
    sig = jax.random.normal(k3, (B, T, N), jnp.float32)
    tod = jax.random.uniform(k4, (B, T, N), jnp.float32)
    dow = jax.random.randint(k5, (B, T, N), 0, 7).astype(jnp.float32)
    x = jnp.stack([sig, tod, dow], axis=-1)              # (B, T, N, C)

    out = temporal_embedding(x, time_day, time_week)
    out = jax.block_until_ready(out)

    ref = _reference(x, time_day, time_week)
    assert out.shape == (B, FEATURES, N, T), out.shape
    assert jnp.allclose(out, ref, atol=1e-5, rtol=1e-5), "mismatch vs reference"

    print("KERNEL_OK")
</pallas_src>

<mosaic_0001>
module attributes {stable_mosaic.version = 11 : i64} {
  func.func @temporal_embedding_kernel(%arg0: memref<2x384xf32, #tpu.memory_space<vmem>>, %arg1: memref<32x55xf32, #tpu.memory_space<vmem>>, %arg2: memref<2x32x192xf32, #tpu.memory_space<vmem>>) attributes {dimension_semantics = [], scalar_prefetch = 0 : i64, scratch_operands = 0 : i64, tpu.core_type = #tpu.core_type<tc>} {
    %c0 = arith.constant 0 : index
    %c0_0 = arith.constant 0 : index
    %0 = vector.load %arg0[%c0, %c0_0] : memref<2x384xf32, #tpu.memory_space<vmem>>, vector<1x384xf32>
    %c1 = arith.constant 1 : index
    %c0_1 = arith.constant 0 : index
    %1 = vector.load %arg0[%c1, %c0_1] : memref<2x384xf32, #tpu.memory_space<vmem>>, vector<1x384xf32>
    %cst = arith.constant 4.800000e+01 : f32
    %2 = vector.broadcast %cst : f32 to vector<1x384xf32>
    %3 = arith.mulf %0, %2 : vector<1x384xf32>
    %4 = arith.fptosi %3 : vector<1x384xf32> to vector<1x384xi32>
    %c0_i32 = arith.constant 0 : i32
    %c47_i32 = arith.constant 47 : i32
    %5 = vector.broadcast %c0_i32 : i32 to vector<1x384xi32>
    %6 = arith.maxsi %5, %4 : vector<1x384xi32>
    %7 = vector.broadcast %c47_i32 : i32 to vector<1x384xi32>
    %8 = arith.minsi %7, %6 : vector<1x384xi32>
    %9 = arith.fptosi %1 : vector<1x384xf32> to vector<1x384xi32>
    %c0_i32_2 = arith.constant 0 : i32
    %c6_i32 = arith.constant 6 : i32
    %10 = vector.broadcast %c0_i32_2 : i32 to vector<1x384xi32>
    %11 = arith.maxsi %10, %9 : vector<1x384xi32>
    %12 = vector.broadcast %c6_i32 : i32 to vector<1x384xi32>
    %13 = arith.minsi %12, %11 : vector<1x384xi32>
    %c48_i32 = arith.constant 48 : i32
    %14 = vector.broadcast %c48_i32 : i32 to vector<1x384xi32>
    %15 = arith.addi %13, %14 : vector<1x384xi32>
    %16 = tpu.iota {dimensions = array<i32: 0>} : vector<55x384xi32>
    %17 = vector.broadcast %8 : vector<1x384xi32> to vector<55x384xi32>
    %18 = arith.cmpi eq, %16, %17 : vector<55x384xi32>
    %19 = vector.broadcast %15 : vector<1x384xi32> to vector<55x384xi32>
    %20 = arith.cmpi eq, %16, %19 : vector<55x384xi32>
    %21 = arith.ori %18, %20 : vector<55x384xi1>
    %22 = arith.extui %21 : vector<55x384xi1> to vector<55x384xi32>
    %23 = arith.sitofp %22 : vector<55x384xi32> to vector<55x384xf32>
    %c0_3 = arith.constant 0 : index
    %c0_4 = arith.constant 0 : index
    %24 = vector.load %arg1[%c0_3, %c0_4] : memref<32x55xf32, #tpu.memory_space<vmem>>, vector<32x55xf32>
    %cst_5 = arith.constant dense<0.000000e+00> : vector<32x384xf32>
    %25 = tpu.matmul %24, %23, %cst_5 {dimension_numbers = #tpu.dot_dimension_numbers<[1], [0], [0], [1], [0, 0, 1, 1], [], []>, precision = #tpu.contract_precision<fp32>} : vector<32x55xf32>, vector<55x384xf32>, vector<32x384xf32> -> vector<32x384xf32>
    %26 = vector.extract_strided_slice %25 {offsets = [0, 0], sizes = [32, 192], strides = [1, 1]} : vector<32x384xf32> to vector<32x192xf32>
    %c0_6 = arith.constant 0 : index
    %c0_7 = arith.constant 0 : index
    %c0_8 = arith.constant 0 : index
    %27 = vector.load %arg2[%c0_6, %c0_7, %c0_8] : memref<2x32x192xf32, #tpu.memory_space<vmem>>, vector<1x32x192xf32>
    %28 = vector.shape_cast %27 : vector<1x32x192xf32> to vector<32x192xf32>
    %29 = vector.shape_cast %26 : vector<32x192xf32> to vector<1x32x192xf32>
    tpu.vector_store %arg2[%c0_6, %c0_7, %c0_8], %29 {strides = array<i32>} : memref<2x32x192xf32, #tpu.memory_space<vmem>>, vector<1x32x192xf32>,
    %30 = vector.extract_strided_slice %25 {offsets = [0, 192], sizes = [32, 192], strides = [1, 1]} : vector<32x384xf32> to vector<32x192xf32>
    %c1_9 = arith.constant 1 : index
    %c0_10 = arith.constant 0 : index
    %c0_11 = arith.constant 0 : index
    %31 = vector.load %arg2[%c1_9, %c0_10, %c0_11] : memref<2x32x192xf32, #tpu.memory_space<vmem>>, vector<1x32x192xf32>
    %32 = vector.shape_cast %31 : vector<1x32x192xf32> to vector<32x192xf32>
    %33 = vector.shape_cast %30 : vector<32x192xf32> to vector<1x32x192xf32>
    tpu.vector_store %arg2[%c1_9, %c0_10, %c0_11], %33 {strides = array<i32>} : memref<2x32x192xf32, #tpu.memory_space<vmem>>, vector<1x32x192xf32>,
    return
  }
}

</mosaic_0001>

<llo_original>
// kernel: temporal_embedding.1
$region0: #{temporal_embedding.1}
  #allocation0 [shape = 'u32[]', space=smem, size = 0x4, offset = 0x4, fixed_abs, tag = 'smem constant byte address 0x4 - core index']
  #allocation1 [shape = 'u32[144,128]{1,0:T(1,128)}', space=vmem, size = 0x12000, scoped, tag = 'internal scratch']
  %s0 = inlined_call_operand.vmem [shape: f32[2,384], index: 0, kind: input, shape index: {}]
  %s1 = inlined_call_operand.vmem [shape: f32[32,55], index: 1, kind: input, shape index: {}]
  %s2 = inlined_call_operand.vmem [shape: f32[2,32,192], index: 2, kind: output, shape index: {}]
  %s3 = sld [smem:[#allocation0]]
  $region18: #{temporal_embedding.1} parent=0
    _
  %s5 = ssub.s32 1, %s3
  %s6 = scalar_select 0, %s5, %s3
  // Predicated region
  $region2: #{temporal_embedding.1} parent=0 // pred_check
    _
  $region3: #{temporal_embedding.1} parent=0 // pred_check_branch
    %8 = sbr.rel (0) target = $region5
  $region4: #{temporal_embedding.1} parent=0 // pred_region
    _
  $region5: #{temporal_embedding.1} parent=0 // pred_fallthru
    _
  // Predicated region
  $region6: #{temporal_embedding.1} parent=0 // pred_check
    _
  $region7: #{temporal_embedding.1} parent=0 // pred_check_branch
    %10 = sbr.rel (0) target = $region9
  $region8: #{temporal_embedding.1} parent=0 // pred_region
    _
  $region9: #{temporal_embedding.1} parent=0 // pred_fallthru
    _
  %v11 = vld [vmem:[%s0] ss:$2 sm:$0x7]
  %s12 = scalar_lea.vmem %s0, 1
  %v13 = vld [vmem:[%s12] ss:$2 sm:$0x7]
  %v14 = vmul.f32 %v11, 48.0
  %v15 = vcvt.f32.s32.to.zero.pseudo %v14
  %vm16 = vcmp.gt.s32.totalorder %v15, 0
  %v17 = vsel %vm16, %v15, 0
  %vm18 = vcmp.lt.s32.totalorder %v17, 47
  %v19 = vsel %vm18, %v17, 47
  %v20 = vcvt.f32.s32.to.zero.pseudo %v13
  %vm21 = vcmp.gt.s32.totalorder %v20, 0
  %v22 = vsel %vm21, %v20, 0
  %vm23 = vcmp.lt.s32.totalorder %v22, 6
  %v24 = vsel %vm23, %v22, 6
  %v25 = vadd.s32 %v24, 48
  %v26 = vlaneseq
  %v27 = vshrl.u32 %v26, 7
  %v28 = vadd.s32 %v27, 8
  %v29 = vadd.s32 %v27, 16
  %v30 = vadd.s32 %v27, 24
  %v31 = vadd.s32 %v27, 32
  %v32 = vadd.s32 %v27, 40
  %v33 = vadd.s32 %v27, 48
  %v34 = vlaneseq
  %v35 = vshrl.u32 %v34, 7
  %v36 = vsub.s32 0, %v35
  %v37 = vrot.slane %v19, %v36
  %v38 = vlaneseq
  %v39 = vshrl.u32 %v38, 7
  %v40 = vsub.s32 1, %v39
  %v41 = vrot.slane %v19, %v40
  %v42 = vlaneseq
  %v43 = vshrl.u32 %v42, 7
  %v44 = vsub.s32 2, %v43
  %v45 = vrot.slane %v19, %v44
  %vm46 = vcmp.eq.s32.totalorder %v27, %v37
  %vm47 = vcmp.eq.s32.totalorder %v27, %v41
  %vm48 = vcmp.eq.s32.totalorder %v27, %v45
  %vm49 = vcmp.eq.s32.totalorder %v28, %v37
  %vm50 = vcmp.eq.s32.totalorder %v28, %v41
  %vm51 = vcmp.eq.s32.totalorder %v28, %v45
  %vm52 = vcmp.eq.s32.totalorder %v29, %v37
  %vm53 = vcmp.eq.s32.totalorder %v29, %v41
  %vm54 = vcmp.eq.s32.totalorder %v29, %v45
  %vm55 = vcmp.eq.s32.totalorder %v30, %v37
  %vm56 = vcmp.eq.s32.totalorder %v30, %v41
  %vm57 = vcmp.eq.s32.totalorder %v30, %v45
  %vm58 = vcmp.eq.s32.totalorder %v31, %v37
  %vm59 = vcmp.eq.s32.totalorder %v31, %v41
  %vm60 = vcmp.eq.s32.totalorder %v31, %v45
  %vm61 = vcmp.eq.s32.totalorder %v32, %v37
  %vm62 = vcmp.eq.s32.totalorder %v32, %v41
  %vm63 = vcmp.eq.s32.totalorder %v32, %v45
  %vm64 = vcmp.eq.s32.totalorder %v33, %v37
  %vm65 = vcmp.eq.s32.totalorder %v33, %v41
  %vm66 = vcmp.eq.s32.totalorder %v33, %v45
  %v67 = vlaneseq
  %v68 = vshrl.u32 %v67, 7
  %v69 = vsub.s32 0, %v68
  %v70 = vrot.slane %v25, %v69
  %v71 = vlaneseq
  %v72 = vshrl.u32 %v71, 7
  %v73 = vsub.s32 1, %v72
  %v74 = vrot.slane %v25, %v73
  %v75 = vlaneseq
  %v76 = vshrl.u32 %v75, 7
  %v77 = vsub.s32 2, %v76
  %v78 = vrot.slane %v25, %v77
  %vm79 = vcmp.eq.s32.totalorder %v27, %v70
  %vm80 = vcmp.eq.s32.totalorder %v27, %v74
  %vm81 = vcmp.eq.s32.totalorder %v27, %v78
  %vm82 = vcmp.eq.s32.totalorder %v28, %v70
  %vm83 = vcmp.eq.s32.totalorder %v28, %v74
  %vm84 = vcmp.eq.s32.totalorder %v28, %v78
  %vm85 = vcmp.eq.s32.totalorder %v29, %v70
  %vm86 = vcmp.eq.s32.totalorder %v29, %v74
  %vm87 = vcmp.eq.s32.totalorder %v29, %v78
  %vm88 = vcmp.eq.s32.totalorder %v30, %v70
  %vm89 = vcmp.eq.s32.totalorder %v30, %v74
  %vm90 = vcmp.eq.s32.totalorder %v30, %v78
  %vm91 = vcmp.eq.s32.totalorder %v31, %v70
  %vm92 = vcmp.eq.s32.totalorder %v31, %v74
  %vm93 = vcmp.eq.s32.totalorder %v31, %v78
  %vm94 = vcmp.eq.s32.totalorder %v32, %v70
  %vm95 = vcmp.eq.s32.totalorder %v32, %v74
  %vm96 = vcmp.eq.s32.totalorder %v32, %v78
  %vm97 = vcmp.eq.s32.totalorder %v33, %v70
  %vm98 = vcmp.eq.s32.totalorder %v33, %v74
  %vm99 = vcmp.eq.s32.totalorder %v33, %v78
  %vm100 = vmor %vm46, %vm79
  %vm101 = vmor %vm47, %vm80
  %vm102 = vmor %vm48, %vm81
  %vm103 = vmor %vm49, %vm82
  %vm104 = vmor %vm50, %vm83
  %vm105 = vmor %vm51, %vm84
  %vm106 = vmor %vm52, %vm85
  %vm107 = vmor %vm53, %vm86
  %vm108 = vmor %vm54, %vm87
  %vm109 = vmor %vm55, %vm88
  %vm110 = vmor %vm56, %vm89
  %vm111 = vmor %vm57, %vm90
  %vm112 = vmor %vm58, %vm91
  %vm113 = vmor %vm59, %vm92
  %vm114 = vmor %vm60, %vm93
  %vm115 = vmor %vm61, %vm94
  %vm116 = vmor %vm62, %vm95
  %vm117 = vmor %vm63, %vm96
  %vm118 = vmor %vm64, %vm97
  %vm119 = vmor %vm65, %vm98
  %vm120 = vmor %vm66, %vm99
  %v121 = vsel %vm100, 1, 0
  %v122 = vsel %vm101, 1, 0
  %v123 = vsel %vm102, 1, 0
  %v124 = vsel %vm103, 1, 0
  %v125 = vsel %vm104, 1, 0
  %v126 = vsel %vm105, 1, 0
  %v127 = vsel %vm106, 1, 0
  %v128 = vsel %vm107, 1, 0
  %v129 = vsel %vm108, 1, 0
  %v130 = vsel %vm109, 1, 0
  %v131 = vsel %vm110, 1, 0
  %v132 = vsel %vm111, 1, 0
  %v133 = vsel %vm112, 1, 0
  %v134 = vsel %vm113, 1, 0
  %v135 = vsel %vm114, 1, 0
  %v136 = vsel %vm115, 1, 0
  %v137 = vsel %vm116, 1, 0
  %v138 = vsel %vm117, 1, 0
  %v139 = vsel %vm118, 1, 0
  %v140 = vsel %vm119, 1, 0
  %v141 = vsel %vm120, 1, 0
  %v142 = vcvt.s32.f32 %v121
  %v143 = vcvt.s32.f32 %v122
  %v144 = vcvt.s32.f32 %v123
  %v145 = vcvt.s32.f32 %v124
  %v146 = vcvt.s32.f32 %v125
  %v147 = vcvt.s32.f32 %v126
  %v148 = vcvt.s32.f32 %v127
  %v149 = vcvt.s32.f32 %v128
  %v150 = vcvt.s32.f32 %v129
  %v151 = vcvt.s32.f32 %v130
  %v152 = vcvt.s32.f32 %v131
  %v153 = vcvt.s32.f32 %v132
  %v154 = vcvt.s32.f32 %v133
  %v155 = vcvt.s32.f32 %v134
  %v156 = vcvt.s32.f32 %v135
  %v157 = vcvt.s32.f32 %v136
  %v158 = vcvt.s32.f32 %v137
  %v159 = vcvt.s32.f32 %v138
  %v160 = vcvt.s32.f32 %v139
  %v161 = vcvt.s32.f32 %v140
  %v162 = vcvt.s32.f32 %v141
  %v163 = vld [vmem:[%s1] sm:$0xff]
  %v164 = vld [vmem:[%s1 + $0x8] sm:$0xff]
  %v165 = vld [vmem:[%s1 + $0x10] sm:$0xff]
  %v166 = vld [vmem:[%s1 + $0x18] sm:$0xff]
  %vm167 = vcmask 449536
  %v169 = vsel %vm167, %v163, 0
  %v172 = vsel %vm167, %v164, 0
  %v175 = vsel %vm167, %v165, 0
  %v178 = vsel %vm167, %v166, 0
  %vm180 = vcmask 1046528
  %v182 = vsel %vm180, %v160, 0
  %v185 = vsel %vm180, %v161, 0
  %v188 = vsel %vm180, %v162, 0
  %v190 = vand.u32 %v143, 4294901760
  %191 = vmatprep.subr.mxu0 %v190
  %v192 = vand.u32 %v142, 4294901760
  %193 = vmatpush1.msra.mxu0 %v192
  %v194 = vand.u32 %v146, 4294901760
  %195 = vmatprep.subr.mxu0 %v194
  %v196 = vand.u32 %v145, 4294901760
  %197 = vmatpush1.msra.mxu0 %v196
  %v198 = vand.u32 %v149, 4294901760
  %199 = vmatprep.subr.mxu0 %v198
  %v200 = vand.u32 %v148, 4294901760
  %201 = vmatpush1.msra.mxu0 %v200
  %v202 = vand.u32 %v152, 4294901760
  %203 = vmatprep.subr.mxu0 %v202
  %v204 = vand.u32 %v151, 4294901760
  %205 = vmatpush1.msra.mxu0 %v204
  %v206 = vand.u32 %v155, 4294901760
  %207 = vmatprep.subr.mxu0 %v206
  %v208 = vand.u32 %v154, 4294901760
  %209 = vmatpush1.msra.mxu0 %v208
  %v210 = vand.u32 %v158, 4294901760
  %211 = vmatprep.subr.mxu0 %v210
  %v212 = vand.u32 %v157, 4294901760
  %213 = vmatpush1.msra.mxu0 %v212
  %v214 = vand.u32 %v185, 4294901760
  %215 = vmatprep.subr.mxu0 %v214
  %v216 = vand.u32 %v182, 4294901760
  %217 = vmatpush1.msra.mxu0 %v216
  %218 = vmatprep.subr.mxu0 0.0
  %219 = vmatpush1.msra.mxu0 0.0
  %220 = vmatprep.subr.mxu0 0.0
  %221 = vmatpush1.msra.mxu0 0.0
  %222 = vmatprep.subr.mxu0 0.0
  %223 = vmatpush1.msra.mxu0 0.0
  %224 = vmatprep.subr.mxu0 0.0
  %225 = vmatpush1.msra.mxu0 0.0
  %226 = vmatprep.subr.mxu0 0.0
  %227 = vmatpush1.msra.mxu0 0.0
  %228 = vmatprep.subr.mxu0 0.0
  %229 = vmatpush1.msra.mxu0 0.0
  %230 = vmatprep.subr.mxu0 0.0
  %231 = vmatpush1.msra.mxu0 0.0
  %232 = vmatprep.subr.mxu0 0.0
  %233 = vmatpush1.msra.mxu0 0.0
  %234 = vmatprep.subr.mxu0 0.0
  %235 = vmatpush1.msra.mxu0 0.0
  %236 = vmatprep.subr.mxu0 0.0
  %237 = vmatpush1.msra.mxu0 0.0
  %238 = vmatprep.subr.mxu0 0.0
  %239 = vmatpush1.msra.mxu0 0.0
  %240 = vmatprep.subr.mxu0 0.0
  %241 = vmatpush1.msra.mxu0 0.0
  %242 = vmatprep.subr.mxu0 0.0
  %243 = vmatpush1.msra.mxu0 0.0
  %244 = vmatprep.subr.mxu0 0.0
  %245 = vmatpush1.msra.mxu0 0.0
  %246 = vmatprep.subr.mxu0 0.0
  %247 = vmatpush1.msra.mxu0 0.0
  %248 = vmatprep.subr.mxu0 0.0
  %249 = vmatpush1.msra.mxu0 0.0
  %250 = vmatprep.subr.mxu0 0.0
  %251 = vmatpush1.msra.mxu0 0.0
  %252 = vmatprep.subr.mxu0 0.0
  %253 = vmatpush1.msra.mxu0 0.0
  %254 = vmatprep.subr.mxu0 0.0
  %255 = vmatpush1.msra.mxu0 0.0
  %256 = vmatprep.subr.mxu0 0.0
  %257 = vmatpush1.msra.mxu0 0.0
  %258 = vmatprep.subr.mxu0 0.0
  %259 = vmatpush1.msra.mxu0 0.0
  %260 = vmatprep.subr.mxu0 0.0
  %261 = vmatpush1.msra.mxu0 0.0
  %262 = vmatprep.subr.mxu0 0.0
  %263 = vmatpush1.msra.mxu0 0.0
  %264 = vmatprep.subr.mxu0 0.0
  %265 = vmatpush1.msra.mxu0 0.0
  %266 = vmatprep.subr.mxu0 0.0
  %267 = vmatpush1.msra.mxu0 0.0
  %268 = vmatprep.mubr.f32.mxu0 0.0
  %v269 = vand.u32 %v169, 4294901760
  %v270 = vsub.f32 %v169, %v269
  %v271 = vand.u32 %v270, 4294901760
  %v272 = vsub.f32 %v270, %v271
  %v273 = vand.u32 %v272, 4294901760
  %274 = vmatmul.mubr.f32.gmra.mrb[0].mxu0 %v273
  %v275 = vpop.f32.mrb[0].mxu0
  %v276 = vadd.f32 0.0, %v275
  %v277 = vpop.f32.mrb[0].mxu0
  %v278 = vadd.f32 0.0, %v277
  %279 = vmatprep.mubr.f32.mxu0 0.0
  %v280 = vand.u32 %v172, 4294901760
  %v281 = vsub.f32 %v172, %v280
  %v282 = vand.u32 %v281, 4294901760
  %v283 = vsub.f32 %v281, %v282
  %v284 = vand.u32 %v283, 4294901760
  %285 = vmatmul.mubr.f32.gmra.mrb[0].mxu0 %v284
  %v286 = vpop.f32.mrb[0].mxu0
  %v287 = vadd.f32 0.0, %v286
  %v288 = vpop.f32.mrb[0].mxu0
  %v289 = vadd.f32 0.0, %v288
  %290 = vmatprep.mubr.f32.mxu0 0.0
  %v291 = vand.u32 %v175, 4294901760
  %v292 = vsub.f32 %v175, %v291
  %v293 = vand.u32 %v292, 4294901760
  %v294 = vsub.f32 %v292, %v293
  %v295 = vand.u32 %v294, 4294901760
  %296 = vmatmul.mubr.f32.gmra.mrb[0].mxu0 %v295
  %v297 = vpop.f32.mrb[0].mxu0
  %v298 = vadd.f32 0.0, %v297
  %v299 = vpop.f32.mrb[0].mxu0
  %v300 = vadd.f32 0.0, %v299
  %301 = vmatprep.mubr.f32.mxu0 0.0
  %v302 = vand.u32 %v178, 4294901760
  %v303 = vsub.f32 %v178, %v302
  %v304 = vand.u32 %v303, 4294901760
  %v305 = vsub.f32 %v303, %v304
  %v306 = vand.u32 %v305, 4294901760
  %307 = vmatmul.mubr.f32.gmra.mrb[0].mxu0 %v306
  %v308 = vpop.f32.mrb[0].mxu0
  %v309 = vadd.f32 0.0, %v308
  %v310 = vpop.f32.mrb[0].mxu0
  %v311 = vadd.f32 0.0, %v310
  %312 = vdwg.mxu0
  %v313 = vand.u32 %v143, 4294901760
  %v314 = vsub.f32 %v143, %v313
  %v315 = vand.u32 %v314, 4294901760
  %v316 = vsub.f32 %v314, %v315
  %v317 = vand.u32 %v316, 4294901760
  %318 = vmatprep.subr.mxu0 %v317
  %v319 = vand.u32 %v142, 4294901760
  %v320 = vsub.f32 %v142, %v319
  %v321 = vand.u32 %v320, 4294901760
  %v322 = vsub.f32 %v320, %v321
  %v323 = vand.u32 %v322, 4294901760
  %324 = vmatpush1.msra.mxu0 %v323
  %v325 = vand.u32 %v146, 4294901760
  %v326 = vsub.f32 %v146, %v325
  %v327 = vand.u32 %v326, 4294901760
  %v328 = vsub.f32 %v326, %v327
  %v329 = vand.u32 %v328, 4294901760
  %330 = vmatprep.subr.mxu0 %v329
  %v331 = vand.u32 %v145, 4294901760
  %v332 = vsub.f32 %v145, %v331
  %v333 = vand.u32 %v332, 4294901760
  %v334 = vsub.f32 %v332, %v333
  %v335 = vand.u32 %v334, 4294901760
  %336 = vmatpush1.msra.mxu0 %v335
  %v337 = vand.u32 %v149, 4294901760
  %v338 = vsub.f32 %v149, %v337
  %v339 = vand.u32 %v338, 4294901760
  %v340 = vsub.f32 %v338, %v339
  %v341 = vand.u32 %v340, 4294901760
  %342 = vmatprep.subr.mxu0 %v341
  %v343 = vand.u32 %v148, 4294901760
  %v344 = vsub.f32 %v148, %v343
  %v345 = vand.u32 %v344, 4294901760
  %v346 = vsub.f32 %v344, %v345
  %v347 = vand.u32 %v346, 4294901760
  %348 = vmatpush1.msra.mxu0 %v347
  %v349 = vand.u32 %v152, 4294901760
  %v350 = vsub.f32 %v152, %v349
  %v351 = vand.u32 %v350, 4294901760
  %v352 = vsub.f32 %v350, %v351
  %v353 = vand.u32 %v352, 4294901760
  %354 = vmatprep.subr.mxu0 %v353
  %v355 = vand.u32 %v151, 4294901760
  %v356 = vsub.f32 %v151, %v355
  %v357 = vand.u32 %v356, 4294901760
  %v358 = vsub.f32 %v356, %v357
  %v359 = vand.u32 %v358, 4294901760
  %360 = vmatpush1.msra.mxu0 %v359
  %v361 = vand.u32 %v155, 4294901760
  %v362 = vsub.f32 %v155, %v361
  %v363 = vand.u32 %v362, 4294901760
  %v364 = vsub.f32 %v362, %v363
  %v365 = vand.u32 %v364, 4294901760
  %366 = vmatprep.subr.mxu0 %v365
  %v367 = vand.u32 %v154, 4294901760
  %v368 = vsub.f32 %v154, %v367
  %v369 = vand.u32 %v368, 4294901760
  %v370 = vsub.f32 %v368, %v369
  %v371 = vand.u32 %v370, 4294901760
  %372 = vmatpush1.msra.mxu0 %v371
  %v373 = vand.u32 %v158, 4294901760
  %v374 = vsub.f32 %v158, %v373
  %v375 = vand.u32 %v374, 4294901760
  %v376 = vsub.f32 %v374, %v375
  %v377 = vand.u32 %v376, 4294901760
  %378 = vmatprep.subr.mxu0 %v377
  %v379 = vand.u32 %v157, 4294901760
  %v380 = vsub.f32 %v157, %v379
  %v381 = vand.u32 %v380, 4294901760
  %v382 = vsub.f32 %v380, %v381
  %v383 = vand.u32 %v382, 4294901760
  %384 = vmatpush1.msra.mxu0 %v383
  %v385 = vand.u32 %v185, 4294901760
  %v386 = vsub.f32 %v185, %v385
  %v387 = vand.u32 %v386, 4294901760
  %v388 = vsub.f32 %v386, %v387
  %v389 = vand.u32 %v388, 4294901760
  %390 = vmatprep.subr.mxu0 %v389
  %v391 = vand.u32 %v182, 4294901760
  %v392 = vsub.f32 %v182, %v391
  %v393 = vand.u32 %v392, 4294901760
  %v394 = vsub.f32 %v392, %v393
  %v395 = vand.u32 %v394, 4294901760
  %396 = vmatpush1.msra.mxu0 %v395
  %397 = vmatprep.subr.mxu0 0.0
  %398 = vmatpush1.msra.mxu0 0.0
  %399 = vmatprep.subr.mxu0 0.0
  %400 = vmatpush1.msra.mxu0 0.0
  %401 = vmatprep.subr.mxu0 0.0
  %402 = vmatpush1.msra.mxu0 0.0
  %403 = vmatprep.subr.mxu0 0.0
  %404 = vmatpush1.msra.mxu0 0.0
  %405 = vmatprep.subr.mxu0 0.0
  %406 = vmatpush1.msra.mxu0 0.0
  %407 = vmatprep.subr.mxu0 0.0
  %408 = vmatpush1.msra.mxu0 0.0
  %409 = vmatprep.subr.mxu0 0.0
  %410 = vmatpush1.msra.mxu0 0.0
  %411 = vmatprep.subr.mxu0 0.0
  %412 = vmatpush1.msra.mxu0 0.0
  %413 = vmatprep.subr.mxu0 0.0
  %414 = vmatpush1.msra.mxu0 0.0
  %415 = vmatprep.subr.mxu0 0.0
  %416 = vmatpush1.msra.mxu0 0.0
  %417 = vmatprep.subr.mxu0 0.0
  %418 = vmatpush1.msra.mxu0 0.0
  %419 = vmatprep.subr.mxu0 0.0
  %420 = vmatpush1.msra.mxu0 0.0
  %421 = vmatprep.subr.mxu0 0.0
  %422 = vmatpush1.msra.mxu0 0.0
  %423 = vmatprep.subr.mxu0 0.0
  %424 = vmatpush1.msra.mxu0 0.0
  %425 = vmatprep.subr.mxu0 0.0
  %426 = vmatpush1.msra.mxu0 0.0
  %427 = vmatprep.subr.mxu0 0.0
  %428 = vmatpush1.msra.mxu0 0.0
  %429 = vmatprep.subr.mxu0 0.0
  %430 = vmatpush1.msra.mxu0 0.0
  %431 = vmatprep.subr.mxu0 0.0
  %432 = vmatpush1.msra.mxu0 0.0
  %433 = vmatprep.subr.mxu0 0.0
  %434 = vmatpush1.msra.mxu0 0.0
  %435 = vmatprep.subr.mxu0 0.0
  %436 = vmatpush1.msra.mxu0 0.0
  %437 = vmatprep.subr.mxu0 0.0
  %438 = vmatpush1.msra.mxu0 0.0
  %439 = vmatprep.subr.mxu0 0.0
  %440 = vmatpush1.msra.mxu0 0.0
  %441 = vmatprep.subr.mxu0 0.0
  %442 = vmatpush1.msra.mxu0 0.0
  %443 = vmatprep.subr.mxu0 0.0
  %444 = vmatpush1.msra.mxu0 0.0
  %445 = vmatprep.subr.mxu0 0.0
  %446 = vmatpush1.msra.mxu0 0.0
  %447 = vmatprep.mubr.f32.mxu0 0.0
  %v448 = vand.u32 %v169, 4294901760
  %449 = vmatmul.mubr.f32.gmra.mrb[0].mxu0 %v448
  %v450 = vpop.f32.mrb[0].mxu0
  %v451 = vadd.f32 %v276, %v450
  %v452 = vpop.f32.mrb[0].mxu0
  %v453 = vadd.f32 %v278, %v452
  %454 = vmatprep.mubr.f32.mxu0 0.0
  %v455 = vand.u32 %v172, 4294901760
  %456 = vmatmul.mubr.f32.gmra.mrb[0].mxu0 %v455
  %v457 = vpop.f32.mrb[0].mxu0
  %v458 = vadd.f32 %v287, %v457
  %v459 = vpop.f32.mrb[0].mxu0
  %v460 = vadd.f32 %v289, %v459
  %461 = vmatprep.mubr.f32.mxu0 0.0
  %v462 = vand.u32 %v175, 4294901760
  %463 = vmatmul.mubr.f32.gmra.mrb[0].mxu0 %v462
  %v464 = vpop.f32.mrb[0].mxu0
  %v465 = vadd.f32 %v298, %v464
  %v466 = vpop.f32.mrb[0].mxu0
  %v467 = vadd.f32 %v300, %v466
  %468 = vmatprep.mubr.f32.mxu0 0.0
  %v469 = vand.u32 %v178, 4294901760
  %470 = vmatmul.mubr.f32.gmra.mrb[0].mxu0 %v469
  %v471 = vpop.f32.mrb[0].mxu0
  %v472 = vadd.f32 %v309, %v471
  %v473 = vpop.f32.mrb[0].mxu0
  %v474 = vadd.f32 %v311, %v473
  %475 = vdwg.mxu0
  %v476 = vand.u32 %v143, 4294901760
  %v477 = vsub.f32 %v143, %v476
  %478 = vmatprep.subr.mxu0 %v477
  %v479 = vand.u32 %v142, 4294901760
  %v480 = vsub.f32 %v142, %v479
  %481 = vmatpush1.msra.mxu0 %v480
  %v482 = vand.u32 %v146, 4294901760
  %v483 = vsub.f32 %v146, %v482
  %484 = vmatprep.subr.mxu0 %v483
  %v485 = vand.u32 %v145, 4294901760
  %v486 = vsub.f32 %v145, %v485
  %487 = vmatpush1.msra.mxu0 %v486
  %v488 = vand.u32 %v149, 4294901760
  %v489 = vsub.f32 %v149, %v488
  %490 = vmatprep.subr.mxu0 %v489
  %v491 = vand.u32 %v148, 4294901760
  %v492 = vsub.f32 %v148, %v491
  %493 = vmatpush1.msra.mxu0 %v492
  %v494 = vand.u32 %v152, 4294901760
  %v495 = vsub.f32 %v152, %v494
  %496 = vmatprep.subr.mxu0 %v495
  %v497 = vand.u32 %v151, 4294901760
  %v498 = vsub.f32 %v151, %v497
  %499 = vmatpush1.msra.mxu0 %v498
  %v500 = vand.u32 %v155, 4294901760
  %v501 = vsub.f32 %v155, %v500
  %502 = vmatprep.subr.mxu0 %v501
  %v503 = vand.u32 %v154, 4294901760
  %v504 = vsub.f32 %v154, %v503
  %505 = vmatpush1.msra.mxu0 %v504
  %v506 = vand.u32 %v158, 4294901760
  %v507 = vsub.f32 %v158, %v506
  %508 = vmatprep.subr.mxu0 %v507
  %v509 = vand.u32 %v157, 4294901760
  %v510 = vsub.f32 %v157, %v509
  %511 = vmatpush1.msra.mxu0 %v510
  %v512 = vand.u32 %v185, 4294901760
  %v513 = vsub.f32 %v185, %v512
  %514 = vmatprep.subr.mxu0 %v513
  %v515 = vand.u32 %v182, 4294901760
  %v516 = vsub.f32 %v182, %v515
  %517 = vmatpush1.msra.mxu0 %v516
  %518 = vmatprep.subr.mxu0 0.0
  %519 = vmatpush1.msra.mxu0 0.0
  %520 = vmatprep.subr.mxu0 0.0
  %521 = vmatpush1.msra.mxu0 0.0
  %522 = vmatprep.subr.mxu0 0.0
  %523 = vmatpush1.msra.mxu0 0.0
  %524 = vmatprep.subr.mxu0 0.0
  %525 = vmatpush1.msra.mxu0 0.0
  %526 = vmatprep.subr.mxu0 0.0
  %527 = vmatpush1.msra.mxu0 0.0
  %528 = vmatprep.subr.mxu0 0.0
  %529 = vmatpush1.msra.mxu0 0.0
  %530 = vmatprep.subr.mxu0 0.0
  %531 = vmatpush1.msra.mxu0 0.0
  %532 = vmatprep.subr.mxu0 0.0
  %533 = vmatpush1.msra.mxu0 0.0
  %534 = vmatprep.subr.mxu0 0.0
  %535 = vmatpush1.msra.mxu0 0.0
  %536 = vmatprep.subr.mxu0 0.0
  %537 = vmatpush1.msra.mxu0 0.0
  %538 = vmatprep.subr.mxu0 0.0
  %539 = vmatpush1.msra.mxu0 0.0
  %540 = vmatprep.subr.mxu0 0.0
  %541 = vmatpush1.msra.mxu0 0.0
  %542 = vmatprep.subr.mxu0 0.0
  %543 = vmatpush1.msra.mxu0 0.0
  %544 = vmatprep.subr.mxu0 0.0
  %545 = vmatpush1.msra.mxu0 0.0
  %546 = vmatprep.subr.mxu0 0.0
  %547 = vmatpush1.msra.mxu0 0.0
  %548 = vmatprep.subr.mxu0 0.0
  %549 = vmatpush1.msra.mxu0 0.0
  %550 = vmatprep.subr.mxu0 0.0
  %551 = vmatpush1.msra.mxu0 0.0
  %552 = vmatprep.subr.mxu0 0.0
  %553 = vmatpush1.msra.mxu0 0.0
  %554 = vmatprep.subr.mxu0 0.0
  %555 = vmatpush1.msra.mxu0 0.0
  %556 = vmatprep.subr.mxu0 0.0
  %557 = vmatpush1.msra.mxu0 0.0
  %558 = vmatprep.subr.mxu0 0.0
  %559 = vmatpush1.msra.mxu0 0.0
  %560 = vmatprep.subr.mxu0 0.0
  %561 = vmatpush1.msra.mxu0 0.0
  %562 = vmatprep.subr.mxu0 0.0
  %563 = vmatpush1.msra.mxu0 0.0
  %564 = vmatprep.subr.mxu0 0.0
  %565 = vmatpush1.msra.mxu0 0.0
  %566 = vmatprep.subr.mxu0 0.0
  %567 = vmatpush1.msra.mxu0 0.0
  %568 = vmatprep.mubr.f32.mxu0 0.0
  %v569 = vand.u32 %v169, 4294901760
  %v570 = vsub.f32 %v169, %v569
  %571 = vmatmul.mubr.f32.gmra.mrb[0].mxu0 %v570
  %v572 = vpop.f32.mrb[0].mxu0
  %v573 = vadd.f32 %v451, %v572
  %v574 = vpop.f32.mrb[0].mxu0
  %v575 = vadd.f32 %v453, %v574
  %576 = vmatprep.mubr.f32.mxu0 0.0
  %v577 = vand.u32 %v172, 4294901760
  %v578 = vsub.f32 %v172, %v577
  %579 = vmatmul.mubr.f32.gmra.mrb[0].mxu0 %v578
  %v580 = vpop.f32.mrb[0].mxu0
  %v581 = vadd.f32 %v458, %v580
  %v582 = vpop.f32.mrb[0].mxu0
  %v583 = vadd.f32 %v460, %v582
  %584 = vmatprep.mubr.f32.mxu0 0.0
  %v585 = vand.u32 %v175, 4294901760
  %v586 = vsub.f32 %v175, %v585
  %587 = vmatmul.mubr.f32.gmra.mrb[0].mxu0 %v586
  %v588 = vpop.f32.mrb[0].mxu0
  %v589 = vadd.f32 %v465, %v588
  %v590 = vpop.f32.mrb[0].mxu0
  %v591 = vadd.f32 %v467, %v590
  %592 = vmatprep.mubr.f32.mxu0 0.0
  %v593 = vand.u32 %v178, 4294901760
  %v594 = vsub.f32 %v178, %v593
  %595 = vmatmul.mubr.f32.gmra.mrb[0].mxu0 %v594
  %v596 = vpop.f32.mrb[0].mxu0
  %v597 = vadd.f32 %v472, %v596
  %v598 = vpop.f32.mrb[0].mxu0
  %v599 = vadd.f32 %v474, %v598
  %600 = vdwg.mxu0
  %v601 = vand.u32 %v143, 4294901760
  %602 = vmatprep.subr.mxu0 %v601
  %v603 = vand.u32 %v142, 4294901760
  %604 = vmatpush1.msra.mxu0 %v603
  %v605 = vand.u32 %v146, 4294901760
  %606 = vmatprep.subr.mxu0 %v605
  %v607 = vand.u32 %v145, 4294901760
  %608 = vmatpush1.msra.mxu0 %v607
  %v609 = vand.u32 %v149, 4294901760
  %610 = vmatprep.subr.mxu0 %v609
  %v611 = vand.u32 %v148, 4294901760
  %612 = vmatpush1.msra.mxu0 %v611
  %v613 = vand.u32 %v152, 4294901760
  %614 = vmatprep.subr.mxu0 %v613
  %v615 = vand.u32 %v151, 4294901760
  %616 = vmatpush1.msra.mxu0 %v615
  %v617 = vand.u32 %v155, 4294901760
  %618 = vmatprep.subr.mxu0 %v617
  %v619 = vand.u32 %v154, 4294901760
  %620 = vmatpush1.msra.mxu0 %v619
  %v621 = vand.u32 %v158, 4294901760
  %622 = vmatprep.subr.mxu0 %v621
  %v623 = vand.u32 %v157, 4294901760
  %624 = vmatpush1.msra.mxu0 %v623
  %v625 = vand.u32 %v185, 4294901760
  %626 = vmatprep.subr.mxu0 %v625
  %v627 = vand.u32 %v182, 4294901760
  %628 = vmatpush1.msra.mxu0 %v627
  %629 = vmatprep.subr.mxu0 0.0
  %630 = vmatpush1.msra.mxu0 0.0
  %631 = vmatprep.subr.mxu0 0.0
  %632 = vmatpush1.msra.mxu0 0.0
  %633 = vmatprep.subr.mxu0 0.0
  %634 = vmatpush1.msra.mxu0 0.0
  %635 = vmatprep.subr.mxu0 0.0
  %636 = vmatpush1.msra.mxu0 0.0
  %637 = vmatprep.subr.mxu0 0.0
  %638 = vmatpush1.msra.mxu0 0.0
  %639 = vmatprep.subr.mxu0 0.0
  %640 = vmatpush1.msra.mxu0 0.0
  %641 = vmatprep.subr.mxu0 0.0
  %642 = vmatpush1.msra.mxu0 0.0
  %643 = vmatprep.subr.mxu0 0.0
  %644 = vmatpush1.msra.mxu0 0.0
  %645 = vmatprep.subr.mxu0 0.0
  %646 = vmatpush1.msra.mxu0 0.0
  %647 = vmatprep.subr.mxu0 0.0
  %648 = vmatpush1.msra.mxu0 0.0
  %649 = vmatprep.subr.mxu0 0.0
  %650 = vmatpush1.msra.mxu0 0.0
  %651 = vmatprep.subr.mxu0 0.0
  %652 = vmatpush1.msra.mxu0 0.0
  %653 = vmatprep.subr.mxu0 0.0
  %654 = vmatpush1.msra.mxu0 0.0
  %655 = vmatprep.subr.mxu0 0.0
  %656 = vmatpush1.msra.mxu0 0.0
  %657 = vmatprep.subr.mxu0 0.0
  %658 = vmatpush1.msra.mxu0 0.0
  %659 = vmatprep.subr.mxu0 0.0
  %660 = vmatpush1.msra.mxu0 0.0
  %661 = vmatprep.subr.mxu0 0.0
  %662 = vmatpush1.msra.mxu0 0.0
  %663 = vmatprep.subr.mxu0 0.0
  %664 = vmatpush1.msra.mxu0 0.0
  %665 = vmatprep.subr.mxu0 0.0
  %666 = vmatpush1.msra.mxu0 0.0
  %667 = vmatprep.subr.mxu0 0.0
  %668 = vmatpush1.msra.mxu0 0.0
  %669 = vmatprep.subr.mxu0 0.0
  %670 = vmatpush1.msra.mxu0 0.0
  %671 = vmatprep.subr.mxu0 0.0
  %672 = vmatpush1.msra.mxu0 0.0
  %673 = vmatprep.subr.mxu0 0.0
  %674 = vmatpush1.msra.mxu0 0.0
  %675 = vmatprep.subr.mxu0 0.0
  %676 = vmatpush1.msra.mxu0 0.0
  %677 = vmatprep.subr.mxu0 0.0
  %678 = vmatpush1.msra.mxu0 0.0
  %679 = vmatprep.mubr.f32.mxu0 0.0
  %v680 = vand.u32 %v169, 4294901760
  %v681 = vsub.f32 %v169, %v680
  %v682 = vand.u32 %v681, 4294901760
  %683 = vmatmul.mubr.f32.gmra.mrb[0].mxu0 %v682
  %v684 = vpop.f32.mrb[0].mxu0
  %v685 = vadd.f32 %v573, %v684
  %v686 = vpop.f32.mrb[0].mxu0
  %v687 = vadd.f32 %v575, %v686
  %688 = vmatprep.mubr.f32.mxu0 0.0
  %v689 = vand.u32 %v172, 4294901760
  %v690 = vsub.f32 %v172, %v689
  %v691 = vand.u32 %v690, 4294901760
  %692 = vmatmul.mubr.f32.gmra.mrb[0].mxu0 %v691
  %v693 = vpop.f32.mrb[0].mxu0
  %v694 = vadd.f32 %v581, %v693
  %v695 = vpop.f32.mrb[0].mxu0
  %v696 = vadd.f32 %v583, %v695
  %697 = vmatprep.mubr.f32.mxu0 0.0
  %v698 = vand.u32 %v175, 4294901760
  %v699 = vsub.f32 %v175, %v698
  %v700 = vand.u32 %v699, 4294901760
  %701 = vmatmul.mubr.f32.gmra.mrb[0].mxu0 %v700
  %v702 = vpop.f32.mrb[0].mxu0
  %v703 = vadd.f32 %v589, %v702
  %v704 = vpop.f32.mrb[0].mxu0
  %v705 = vadd.f32 %v591, %v704
  %706 = vmatprep.mubr.f32.mxu0 0.0
  %v707 = vand.u32 %v178, 4294901760
  %v708 = vsub.f32 %v178, %v707
  %v709 = vand.u32 %v708, 4294901760
  %710 = vmatmul.mubr.f32.gmra.mrb[0].mxu0 %v709
  %v711 = vpop.f32.mrb[0].mxu0
  %v712 = vadd.f32 %v597, %v711
  %v713 = vpop.f32.mrb[0].mxu0
  %v714 = vadd.f32 %v599, %v713
  %715 = vdwg.mxu0
  %v716 = vand.u32 %v143, 4294901760
  %v717 = vsub.f32 %v143, %v716
  %v718 = vand.u32 %v717, 4294901760
  %719 = vmatprep.subr.mxu0 %v718
  %v720 = vand.u32 %v142, 4294901760
  %v721 = vsub.f32 %v142, %v720
  %v722 = vand.u32 %v721, 4294901760
  %723 = vmatpush1.msra.mxu0 %v722
  %v724 = vand.u32 %v146, 4294901760
  %v725 = vsub.f32 %v146, %v724
  %v726 = vand.u32 %v725, 4294901760
  %727 = vmatprep.subr.mxu0 %v726
  %v728 = vand.u32 %v145, 4294901760
  %v729 = vsub.f32 %v145, %v728
  %v730 = vand.u32 %v729, 4294901760
  %731 = vmatpush1.msra.mxu0 %v730
  %v732 = vand.u32 %v149, 4294901760
  %v733 = vsub.f32 %v149, %v732
  %v734 = vand.u32 %v733, 4294901760
  %735 = vmatprep.subr.mxu0 %v734
  %v736 = vand.u32 %v148, 4294901760
  %v737 = vsub.f32 %v148, %v736
  %v738 = vand.u32 %v737, 4294901760
  %739 = vmatpush1.msra.mxu0 %v738
  %v740 = vand.u32 %v152, 4294901760
  %v741 = vsub.f32 %v152, %v740
  %v742 = vand.u32 %v741, 4294901760
  %743 = vmatprep.subr.mxu0 %v742
  %v744 = vand.u32 %v151, 4294901760
  %v745 = vsub.f32 %v151, %v744
  %v746 = vand.u32 %v745, 4294901760
  %747 = vmatpush1.msra.mxu0 %v746
  %v748 = vand.u32 %v155, 4294901760
  %v749 = vsub.f32 %v155, %v748
  %v750 = vand.u32 %v749, 4294901760
  %751 = vmatprep.subr.mxu0 %v750
  %v752 = vand.u32 %v154, 4294901760
  %v753 = vsub.f32 %v154, %v752
  %v754 = vand.u32 %v753, 4294901760
  %755 = vmatpush1.msra.mxu0 %v754
  %v756 = vand.u32 %v158, 4294901760
  %v757 = vsub.f32 %v158, %v756
  %v758 = vand.u32 %v757, 4294901760
  %759 = vmatprep.subr.mxu0 %v758
  %v760 = vand.u32 %v157, 4294901760
  %v761 = vsub.f32 %v157, %v760
  %v762 = vand.u32 %v761, 4294901760
  %763 = vmatpush1.msra.mxu0 %v762
  %v764 = vand.u32 %v185, 4294901760
  %v765 = vsub.f32 %v185, %v764
  %v766 = vand.u32 %v765, 4294901760
  %767 = vmatprep.subr.mxu0 %v766
  %v768 = vand.u32 %v182, 4294901760
  %v769 = vsub.f32 %v182, %v768
  %v770 = vand.u32 %v769, 4294901760
  %771 = vmatpush1.msra.mxu0 %v770
  %772 = vmatprep.subr.mxu0 0.0
  %773 = vmatpush1.msra.mxu0 0.0
  %774 = vmatprep.subr.mxu0 0.0
  %775 = vmatpush1.msra.mxu0 0.0
  %776 = vmatprep.subr.mxu0 0.0
  %777 = vmatpush1.msra.mxu0 0.0
  %778 = vmatprep.subr.mxu0 0.0
  %779 = vmatpush1.msra.mxu0 0.0
  %780 = vmatprep.subr.mxu0 0.0
  %781 = vmatpush1.msra.mxu0 0.0
  %782 = vmatprep.subr.mxu0 0.0
  %783 = vmatpush1.msra.mxu0 0.0
  %784 = vmatprep.subr.mxu0 0.0
  %785 = vmatpush1.msra.mxu0 0.0
  %786 = vmatprep.subr.mxu0 0.0
  %787 = vmatpush1.msra.mxu0 0.0
  %788 = vmatprep.subr.mxu0 0.0
  %789 = vmatpush1.msra.mxu0 0.0
  %790 = vmatprep.subr.mxu0 0.0
  %791 = vmatpush1.msra.mxu0 0.0
  %792 = vmatprep.subr.mxu0 0.0
  %793 = vmatpush1.msra.mxu0 0.0
  %794 = vmatprep.subr.mxu0 0.0
  %795 = vmatpush1.msra.mxu0 0.0
  %796 = vmatprep.subr.mxu0 0.0
  %797 = vmatpush1.msra.mxu0 0.0
  %798 = vmatprep.subr.mxu0 0.0
  %799 = vmatpush1.msra.mxu0 0.0
  %800 = vmatprep.subr.mxu0 0.0
  %801 = vmatpush1.msra.mxu0 0.0
  %802 = vmatprep.subr.mxu0 0.0
  %803 = vmatpush1.msra.mxu0 0.0
  %804 = vmatprep.subr.mxu0 0.0
  %805 = vmatpush1.msra.mxu0 0.0
  %806 = vmatprep.subr.mxu0 0.0
  %807 = vmatpush1.msra.mxu0 0.0
  %808 = vmatprep.subr.mxu0 0.0
  %809 = vmatpush1.msra.mxu0 0.0
  %810 = vmatprep.subr.mxu0 0.0
  %811 = vmatpush1.msra.mxu0 0.0
  %812 = vmatprep.subr.mxu0 0.0
  %813 = vmatpush1.msra.mxu0 0.0
  %814 = vmatprep.subr.mxu0 0.0
  %815 = vmatpush1.msra.mxu0 0.0
  %816 = vmatprep.subr.mxu0 0.0
  %817 = vmatpush1.msra.mxu0 0.0
  %818 = vmatprep.subr.mxu0 0.0
  %819 = vmatpush1.msra.mxu0 0.0
  %820 = vmatprep.subr.mxu0 0.0
  %821 = vmatpush1.msra.mxu0 0.0
  %822 = vmatprep.mubr.f32.mxu0 0.0
  %v823 = vand.u32 %v169, 4294901760
  %824 = vmatmul.mubr.f32.gmra.mrb[0].mxu0 %v823
  %v825 = vpop.f32.mrb[0].mxu0
  %v826 = vadd.f32 %v685, %v825
  %v827 = vpop.f32.mrb[0].mxu0
  %v828 = vadd.f32 %v687, %v827
  %829 = vmatprep.mubr.f32.mxu0 0.0
  %v830 = vand.u32 %v172, 4294901760
  %831 = vmatmul.mubr.f32.gmra.mrb[0].mxu0 %v830
  %v832 = vpop.f32.mrb[0].mxu0
  %v833 = vadd.f32 %v694, %v832
  %v834 = vpop.f32.mrb[0].mxu0
  %v835 = vadd.f32 %v696, %v834
  %836 = vmatprep.mubr.f32.mxu0 0.0
  %v837 = vand.u32 %v175, 4294901760
  %838 = vmatmul.mubr.f32.gmra.mrb[0].mxu0 %v837
  %v839 = vpop.f32.mrb[0].mxu0
  %v840 = vadd.f32 %v703, %v839
  %v841 = vpop.f32.mrb[0].mxu0
  %v842 = vadd.f32 %v705, %v841
  %843 = vmatprep.mubr.f32.mxu0 0.0
  %v844 = vand.u32 %v178, 4294901760
  %845 = vmatmul.mubr.f32.gmra.mrb[0].mxu0 %v844
  %v846 = vpop.f32.mrb[0].mxu0
  %v847 = vadd.f32 %v712, %v846
  %v848 = vpop.f32.mrb[0].mxu0
  %v849 = vadd.f32 %v714, %v848
  %850 = vdwg.mxu0
  %v851 = vand.u32 %v143, 4294901760
  %852 = vmatprep.subr.mxu0 %v851
  %v853 = vand.u32 %v142, 4294901760
  %854 = vmatpush1.msra.mxu0 %v853
  %v855 = vand.u32 %v146, 4294901760
  %856 = vmatprep.subr.mxu0 %v855
  %v857 = vand.u32 %v145, 4294901760
  %858 = vmatpush1.msra.mxu0 %v857
  %v859 = vand.u32 %v149, 4294901760
  %860 = vmatprep.subr.mxu0 %v859
  %v861 = vand.u32 %v148, 4294901760
  %862 = vmatpush1.msra.mxu0 %v861
  %v863 = vand.u32 %v152, 4294901760
  %864 = vmatprep.subr.mxu0 %v863
  %v865 = vand.u32 %v151, 4294901760
  %866 = vmatpush1.msra.mxu0 %v865
  %v867 = vand.u32 %v155, 4294901760
  %868 = vmatprep.subr.mxu0 %v867
  %v869 = vand.u32 %v154, 4294901760
  %870 = vmatpush1.msra.mxu0 %v869
  %v871 = vand.u32 %v158, 4294901760
  %872 = vmatprep.subr.mxu0 %v871
  %v873 = vand.u32 %v157, 4294901760
  %874 = vmatpush1.msra.mxu0 %v873
  %v875 = vand.u32 %v185, 4294901760
  %876 = vmatprep.subr.mxu0 %v875
  %v877 = vand.u32 %v182, 4294901760
  %878 = vmatpush1.msra.mxu0 %v877
  %879 = vmatprep.subr.mxu0 0.0
  %880 = vmatpush1.msra.mxu0 0.0
  %881 = vmatprep.subr.mxu0 0.0
  %882 = vmatpush1.msra.mxu0 0.0
  %883 = vmatprep.subr.mxu0 0.0
  %884 = vmatpush1.msra.mxu0 0.0
  %885 = vmatprep.subr.mxu0 0.0
  %886 = vmatpush1.msra.mxu0 0.0
  %887 = vmatprep.subr.mxu0 0.0
  %888 = vmatpush1.msra.mxu0 0.0
  %889 = vmatprep.subr.mxu0 0.0
  %890 = vmatpush1.msra.mxu0 0.0
  %891 = vmatprep.subr.mxu0 0.0
  %892 = vmatpush1.msra.mxu0 0.0
  %893 = vmatprep.subr.mxu0 0.0
  %894 = vmatpush1.msra.mxu0 0.0
  %895 = vmatprep.subr.mxu0 0.0
  %896 = vmatpush1.msra.mxu0 0.0
  %897 = vmatprep.subr.mxu0 0.0
  %898 = vmatpush1.msra.mxu0 0.0
  %899 = vmatprep.subr.mxu0 0.0
  %900 = vmatpush1.msra.mxu0 0.0
  %901 = vmatprep.subr.mxu0 0.0
  %902 = vmatpush1.msra.mxu0 0.0
  %903 = vmatprep.subr.mxu0 0.0
  %904 = vmatpush1.msra.mxu0 0.0
  %905 = vmatprep.subr.mxu0 0.0
  %906 = vmatpush1.msra.mxu0 0.0
  %907 = vmatprep.subr.mxu0 0.0
  %908 = vmatpush1.msra.mxu0 0.0
  %909 = vmatprep.subr.mxu0 0.0
  %910 = vmatpush1.msra.mxu0 0.0
  %911 = vmatprep.subr.mxu0 0.0
  %912 = vmatpush1.msra.mxu0 0.0
  %913 = vmatprep.subr.mxu0 0.0
  %914 = vmatpush1.msra.mxu0 0.0
  %915 = vmatprep.subr.mxu0 0.0
  %916 = vmatpush1.msra.mxu0 0.0
  %917 = vmatprep.subr.mxu0 0.0
  %918 = vmatpush1.msra.mxu0 0.0
  %919 = vmatprep.subr.mxu0 0.0
  %920 = vmatpush1.msra.mxu0 0.0
  %921 = vmatprep.subr.mxu0 0.0
  %922 = vmatpush1.msra.mxu0 0.0
  %923 = vmatprep.subr.mxu0 0.0
  %924 = vmatpush1.msra.mxu0 0.0
  %925 = vmatprep.subr.mxu0 0.0
  %926 = vmatpush1.msra.mxu0 0.0
  %927 = vmatprep.subr.mxu0 0.0
  %928 = vmatpush1.msra.mxu0 0.0
  %929 = vmatprep.mubr.f32.mxu0 0.0
  %v930 = vand.u32 %v169, 4294901760
  %931 = vmatmul.mubr.f32.gmra.mrb[0].mxu0 %v930
  %v932 = vpop.f32.mrb[0].mxu0
  %v933 = vadd.f32 %v826, %v932
  %v934 = vpop.f32.mrb[0].mxu0
  %v935 = vadd.f32 %v828, %v934
  %936 = vmatprep.mubr.f32.mxu0 0.0
  %v937 = vand.u32 %v172, 4294901760
  %938 = vmatmul.mubr.f32.gmra.mrb[0].mxu0 %v937
  %v939 = vpop.f32.mrb[0].mxu0
  %v940 = vadd.f32 %v833, %v939
  %v941 = vpop.f32.mrb[0].mxu0
  %v942 = vadd.f32 %v835, %v941
  %943 = vmatprep.mubr.f32.mxu0 0.0
  %v944 = vand.u32 %v175, 4294901760
  %945 = vmatmul.mubr.f32.gmra.mrb[0].mxu0 %v944
  %v946 = vpop.f32.mrb[0].mxu0
  %v947 = vadd.f32 %v840, %v946
  %v948 = vpop.f32.mrb[0].mxu0
  %v949 = vadd.f32 %v842, %v948
  %950 = vmatprep.mubr.f32.mxu0 0.0
  %v951 = vand.u32 %v178, 4294901760
  %952 = vmatmul.mubr.f32.gmra.mrb[0].mxu0 %v951
  %v953 = vpop.f32.mrb[0].mxu0
  %v954 = vadd.f32 %v847, %v953
  %v955 = vpop.f32.mrb[0].mxu0
  %v956 = vadd.f32 %v849, %v955
  %957 = vdwg.mxu0
  %958 = vmatprep.subr.mxu0 0.0
  %v959 = vand.u32 %v144, 4294901760
  %960 = vmatpush1.msra.mxu0 %v959
  %961 = vmatprep.subr.mxu0 0.0
  %v962 = vand.u32 %v147, 4294901760
  %963 = vmatpush1.msra.mxu0 %v962
  %964 = vmatprep.subr.mxu0 0.0
  %v965 = vand.u32 %v150, 4294901760
  %966 = vmatpush1.msra.mxu0 %v965
  %967 = vmatprep.subr.mxu0 0.0
  %v968 = vand.u32 %v153, 4294901760
  %969 = vmatpush1.msra.mxu0 %v968
  %970 = vmatprep.subr.mxu0 0.0
  %v971 = vand.u32 %v156, 4294901760
  %972 = vmatpush1.msra.mxu0 %v971
  %973 = vmatprep.subr.mxu0 0.0
  %v974 = vand.u32 %v159, 4294901760
  %975 = vmatpush1.msra.mxu0 %v974
  %976 = vmatprep.subr.mxu0 0.0
  %v977 = vand.u32 %v188, 4294901760
  %978 = vmatpush1.msra.mxu0 %v977
  %979 = vmatprep.subr.mxu0 0.0
  %980 = vmatpush1.msra.mxu0 0.0
  %981 = vmatprep.subr.mxu0 0.0
  %982 = vmatpush1.msra.mxu0 0.0
  %983 = vmatprep.subr.mxu0 0.0
  %984 = vmatpush1.msra.mxu0 0.0
  %985 = vmatprep.subr.mxu0 0.0
  %986 = vmatpush1.msra.mxu0 0.0
  %987 = vmatprep.subr.mxu0 0.0
  %988 = vmatpush1.msra.mxu0 0.0
  %989 = vmatprep.subr.mxu0 0.0
  %990 = vmatpush1.msra.mxu0 0.0
  %991 = vmatprep.subr.mxu0 0.0
  %992 = vmatpush1.msra.mxu0 0.0
  %993 = vmatprep.subr.mxu0 0.0
  %994 = vmatpush1.msra.mxu0 0.0
  %995 = vmatprep.subr.mxu0 0.0
  %996 = vmatpush1.msra.mxu0 0.0
  %997 = vmatprep.subr.mxu0 0.0
  %998 = vmatpush1.msra.mxu0 0.0
  %999 = vmatprep.subr.mxu0 0.0
  %1000 = vmatpush1.msra.mxu0 0.0
  %1001 = vmatprep.subr.mxu0 0.0
  %1002 = vmatpush1.msra.mxu0 0.0
  %1003 = vmatprep.subr.mxu0 0.0
  %1004 = vmatpush1.msra.mxu0 0.0
  %1005 = vmatprep.subr.mxu0 0.0
  %1006 = vmatpush1.msra.mxu0 0.0
  %1007 = vmatprep.subr.mxu0 0.0
  %1008 = vmatpush1.msra.mxu0 0.0
  %1009 = vmatprep.subr.mxu0 0.0
  %1010 = vmatpush1.msra.mxu0 0.0
  %1011 = vmatprep.subr.mxu0 0.0
  %1012 = vmatpush1.msra.mxu0 0.0
  %1013 = vmatprep.subr.mxu0 0.0
  %1014 = vmatpush1.msra.mxu0 0.0
  %1015 = vmatprep.subr.mxu0 0.0
  %1016 = vmatpush1.msra.mxu0 0.0
  %1017 = vmatprep.subr.mxu0 0.0
  %1018 = vmatpush1.msra.mxu0 0.0
  %1019 = vmatprep.subr.mxu0 0.0
  %1020 = vmatpush1.msra.mxu0 0.0
  %1021 = vmatprep.subr.mxu0 0.0
  %1022 = vmatpush1.msra.mxu0 0.0
  %1023 = vmatprep.subr.mxu0 0.0
  %1024 = vmatpush1.msra.mxu0 0.0
  %1025 = vmatprep.subr.mxu0 0.0
  %1026 = vmatpush1.msra.mxu0 0.0
  %1027 = vmatprep.subr.mxu0 0.0
  %1028 = vmatpush1.msra.mxu0 0.0
  %1029 = vmatprep.mubr.f32.mxu0 0.0
  %v1030 = vand.u32 %v169, 4294901760
  %v1031 = vsub.f32 %v169, %v1030
  %v1032 = vand.u32 %v1031, 4294901760
  %v1033 = vsub.f32 %v1031, %v1032
  %v1034 = vand.u32 %v1033, 4294901760
  %1035 = vmatmul.mubr.f32.gmra.mrb[0].mxu0 %v1034
  %v1036 = vpop.f32.mrb[0].mxu0
  %v1037 = vadd.f32 0.0, %v1036
  %v1038 = vpop.f32.mrb[0].mxu0
  %1039 = vmatprep.mubr.f32.mxu0 0.0
  %v1040 = vand.u32 %v172, 4294901760
  %v1041 = vsub.f32 %v172, %v1040
  %v1042 = vand.u32 %v1041, 4294901760
  %v1043 = vsub.f32 %v1041, %v1042
  %v1044 = vand.u32 %v1043, 4294901760
  %1045 = vmatmul.mubr.f32.gmra.mrb[0].mxu0 %v1044
  %v1046 = vpop.f32.mrb[0].mxu0
  %v1047 = vadd.f32 0.0, %v1046
  %v1048 = vpop.f32.mrb[0].mxu0
  %1049 = vmatprep.mubr.f32.mxu0 0.0
  %v1050 = vand.u32 %v175, 4294901760
  %v1051 = vsub.f32 %v175, %v1050
  %v1052 = vand.u32 %v1051, 4294901760
  %v1053 = vsub.f32 %v1051, %v1052
  %v1054 = vand.u32 %v1053, 4294901760
  %1055 = vmatmul.mubr.f32.gmra.mrb[0].mxu0 %v1054
  %v1056 = vpop.f32.mrb[0].mxu0
  %v1057 = vadd.f32 0.0, %v1056
  %v1058 = vpop.f32.mrb[0].mxu0
  %1059 = vmatprep.mubr.f32.mxu0 0.0
  %v1060 = vand.u32 %v178, 4294901760
  %v1061 = vsub.f32 %v178, %v1060
  %v1062 = vand.u32 %v1061, 4294901760
  %v1063 = vsub.f32 %v1061, %v1062
  %v1064 = vand.u32 %v1063, 4294901760
  %1065 = vmatmul.mubr.f32.gmra.mrb[0].mxu0 %v1064
  %v1066 = vpop.f32.mrb[0].mxu0
  %v1067 = vadd.f32 0.0, %v1066
  %v1068 = vpop.f32.mrb[0].mxu0
  %1069 = vdwg.mxu0
  %1070 = vmatprep.subr.mxu0 0.0
  %v1071 = vand.u32 %v144, 4294901760
  %v1072 = vsub.f32 %v144, %v1071
  %v1073 = vand.u32 %v1072, 4294901760
  %v1074 = vsub.f32 %v1072, %v1073
  %v1075 = vand.u32 %v1074, 4294901760
  %1076 = vmatpush1.msra.mxu0 %v1075
  %1077 = vmatprep.subr.mxu0 0.0
  %v1078 = vand.u32 %v147, 4294901760
  %v1079 = vsub.f32 %v147, %v1078
  %v1080 = vand.u32 %v1079, 4294901760
  %v1081 = vsub.f32 %v1079, %v1080
  %v1082 = vand.u32 %v1081, 4294901760
  %1083 = vmatpush1.msra.mxu0 %v1082
  %1084 = vmatprep.subr.mxu0 0.0
  %v1085 = vand.u32 %v150, 4294901760
  %v1086 = vsub.f32 %v150, %v1085
  %v1087 = vand.u32 %v1086, 4294901760
  %v1088 = vsub.f32 %v1086, %v1087
  %v1089 = vand.u32 %v1088, 4294901760
  %1090 = vmatpush1.msra.mxu0 %v1089
  %1091 = vmatprep.subr.mxu0 0.0
  %v1092 = vand.u32 %v153, 4294901760
  %v1093 = vsub.f32 %v153, %v1092
  %v1094 = vand.u32 %v1093, 4294901760
  %v1095 = vsub.f32 %v1093, %v1094
  %v1096 = vand.u32 %v1095, 4294901760
  %1097 = vmatpush1.msra.mxu0 %v1096
  %1098 = vmatprep.subr.mxu0 0.0
  %v1099 = vand.u32 %v156, 4294901760
  %v1100 = vsub.f32 %v156, %v1099
  %v1101 = vand.u32 %v1100, 4294901760
  %v1102 = vsub.f32 %v1100, %v1101
  %v1103 = vand.u32 %v1102, 4294901760
  %1104 = vmatpush1.msra.mxu0 %v1103
  %1105 = vmatprep.subr.mxu0 0.0
  %v1106 = vand.u32 %v159, 4294901760
  %v1107 = vsub.f32 %v159, %v1106
  %v1108 = vand.u32 %v1107, 4294901760
  %v1109 = vsub.f32 %v1107, %v1108
  %v1110 = vand.u32 %v1109, 4294901760
  %1111 = vmatpush1.msra.mxu0 %v1110
  %1112 = vmatprep.subr.mxu0 0.0
  %v1113 = vand.u32 %v188, 4294901760
  %v1114 = vsub.f32 %v188, %v1113
  %v1115 = vand.u32 %v1114, 4294901760
  %v1116 = vsub.f32 %v1114, %v1115
  %v1117 = vand.u32 %v1116, 4294901760
  %1118 = vmatpush1.msra.mxu0 %v1117
  %1119 = vmatprep.subr.mxu0 0.0
  %1120 = vmatpush1.msra.mxu0 0.0
  %1121 = vmatprep.subr.mxu0 0.0
  %1122 = vmatpush1.msra.mxu0 0.0
  %1123 = vmatprep.subr.mxu0 0.0
  %1124 = vmatpush1.msra.mxu0 0.0
  %1125 = vmatprep.subr.mxu0 0.0
  %1126 = vmatpush1.msra.mxu0 0.0
  %1127 = vmatprep.subr.mxu0 0.0
  %1128 = vmatpush1.msra.mxu0 0.0
  %1129 = vmatprep.subr.mxu0 0.0
  %1130 = vmatpush1.msra.mxu0 0.0
  %1131 = vmatprep.subr.mxu0 0.0
  %1132 = vmatpush1.msra.mxu0 0.0
  %1133 = vmatprep.subr.mxu0 0.0
  %1134 = vmatpush1.msra.mxu0 0.0
  %1135 = vmatprep.subr.mxu0 0.0
  %1136 = vmatpush1.msra.mxu0 0.0
  %1137 = vmatprep.subr.mxu0 0.0
  %1138 = vmatpush1.msra.mxu0 0.0
  %1139 = vmatprep.subr.mxu0 0.0
  %1140 = vmatpush1.msra.mxu0 0.0
  %1141 = vmatprep.subr.mxu0 0.0
  %1142 = vmatpush1.msra.mxu0 0.0
  %1143 = vmatprep.subr.mxu0 0.0
  %1144 = vmatpush1.msra.mxu0 0.0
  %1145 = vmatprep.subr.mxu0 0.0
  %1146 = vmatpush1.msra.mxu0 0.0
  %1147 = vmatprep.subr.mxu0 0.0
  %1148 = vmatpush1.msra.mxu0 0.0
  %1149 = vmatprep.subr.mxu0 0.0
  %1150 = vmatpush1.msra.mxu0 0.0
  %1151 = vmatprep.subr.mxu0 0.0
  %1152 = vmatpush1.msra.mxu0 0.0
  %1153 = vmatprep.subr.mxu0 0.0
  %1154 = vmatpush1.msra.mxu0 0.0
  %1155 = vmatprep.subr.mxu0 0.0
  %1156 = vmatpush1.msra.mxu0 0.0
  %1157 = vmatprep.subr.mxu0 0.0
  %1158 = vmatpush1.msra.mxu0 0.0
  %1159 = vmatprep.subr.mxu0 0.0
  %1160 = vmatpush1.msra.mxu0 0.0
  %1161 = vmatprep.subr.mxu0 0.0
  %1162 = vmatpush1.msra.mxu0 0.0
  %1163 = vmatprep.subr.mxu0 0.0
  %1164 = vmatpush1.msra.mxu0 0.0
  %1165 = vmatprep.subr.mxu0 0.0
  %1166 = vmatpush1.msra.mxu0 0.0
  %1167 = vmatprep.subr.mxu0 0.0
  %1168 = vmatpush1.msra.mxu0 0.0
  %1169 = vmatprep.mubr.f32.mxu0 0.0
  %v1170 = vand.u32 %v169, 4294901760
  %1171 = vmatmul.mubr.f32.gmra.mrb[0].mxu0 %v1170
  %v1172 = vpop.f32.mrb[0].mxu0
  %v1173 = vadd.f32 %v1037, %v1172
  %v1174 = vpop.f32.mrb[0].mxu0
  %1175 = vmatprep.mubr.f32.mxu0 0.0
  %v1176 = vand.u32 %v172, 4294901760
  %1177 = vmatmul.mubr.f32.gmra.mrb[0].mxu0 %v1176
  %v1178 = vpop.f32.mrb[0].mxu0
  %v1179 = vadd.f32 %v1047, %v1178
  %v1180 = vpop.f32.mrb[0].mxu0
  %1181 = vmatprep.mubr.f32.mxu0 0.0
  %v1182 = vand.u32 %v175, 4294901760
  %1183 = vmatmul.mubr.f32.gmra.mrb[0].mxu0 %v1182
  %v1184 = vpop.f32.mrb[0].mxu0
  %v1185 = vadd.f32 %v1057, %v1184
  %v1186 = vpop.f32.mrb[0].mxu0
  %1187 = vmatprep.mubr.f32.mxu0 0.0
  %v1188 = vand.u32 %v178, 4294901760
  %1189 = vmatmul.mubr.f32.gmra.mrb[0].mxu0 %v1188
  %v1190 = vpop.f32.mrb[0].mxu0
  %v1191 = vadd.f32 %v1067, %v1190
  %v1192 = vpop.f32.mrb[0].mxu0
  %1193 = vdwg.mxu0
  %1194 = vmatprep.subr.mxu0 0.0
  %v1195 = vand.u32 %v144, 4294901760
  %v1196 = vsub.f32 %v144, %v1195
  %1197 = vmatpush1.msra.mxu0 %v1196
  %1198 = vmatprep.subr.mxu0 0.0
  %v1199 = vand.u32 %v147, 4294901760
  %v1200 = vsub.f32 %v147, %v1199
  %1201 = vmatpush1.msra.mxu0 %v1200
  %1202 = vmatprep.subr.mxu0 0.0
  %v1203 = vand.u32 %v150, 4294901760
  %v1204 = vsub.f32 %v150, %v1203
  %1205 = vmatpush1.msra.mxu0 %v1204
  %1206 = vmatprep.subr.mxu0 0.0
  %v1207 = vand.u32 %v153, 4294901760
  %v1208 = vsub.f32 %v153, %v1207
  %1209 = vmatpush1.msra.mxu0 %v1208
  %1210 = vmatprep.subr.mxu0 0.0
  %v1211 = vand.u32 %v156, 4294901760
  %v1212 = vsub.f32 %v156, %v1211
  %1213 = vmatpush1.msra.mxu0 %v1212
  %1214 = vmatprep.subr.mxu0 0.0
  %v1215 = vand.u32 %v159, 4294901760
  %v1216 = vsub.f32 %v159, %v1215
  %1217 = vmatpush1.msra.mxu0 %v1216
  %1218 = vmatprep.subr.mxu0 0.0
  %v1219 = vand.u32 %v188, 4294901760
  %v1220 = vsub.f32 %v188, %v1219
  %1221 = vmatpush1.msra.mxu0 %v1220
  %1222 = vmatprep.subr.mxu0 0.0
  %1223 = vmatpush1.msra.mxu0 0.0
  %1224 = vmatprep.subr.mxu0 0.0
  %1225 = vmatpush1.msra.mxu0 0.0
  %1226 = vmatprep.subr.mxu0 0.0
  %1227 = vmatpush1.msra.mxu0 0.0
  %1228 = vmatprep.subr.mxu0 0.0
  %1229 = vmatpush1.msra.mxu0 0.0
  %1230 = vmatprep.subr.mxu0 0.0
  %1231 = vmatpush1.msra.mxu0 0.0
  %1232 = vmatprep.subr.mxu0 0.0
  %1233 = vmatpush1.msra.mxu0 0.0
  %1234 = vmatprep.subr.mxu0 0.0
  %1235 = vmatpush1.msra.mxu0 0.0
  %1236 = vmatprep.subr.mxu0 0.0
  %1237 = vmatpush1.msra.mxu0 0.0
  %1238 = vmatprep.subr.mxu0 0.0
  %1239 = vmatpush1.msra.mxu0 0.0
  %1240 = vmatprep.subr.mxu0 0.0
  %1241 = vmatpush1.msra.mxu0 0.0
  %1242 = vmatprep.subr.mxu0 0.0
  %1243 = vmatpush1.msra.mxu0 0.0
  %1244 = vmatprep.subr.mxu0 0.0
  %1245 = vmatpush1.msra.mxu0 0.0
  %1246 = vmatprep.subr.mxu0 0.0
  %1247 = vmatpush1.msra.mxu0 0.0
  %1248 = vmatprep.subr.mxu0 0.0
  %1249 = vmatpush1.msra.mxu0 0.0
  %1250 = vmatprep.subr.mxu0 0.0
  %1251 = vmatpush1.msra.mxu0 0.0
  %1252 = vmatprep.subr.mxu0 0.0
  %1253 = vmatpush1.msra.mxu0 0.0
  %1254 = vmatprep.subr.mxu0 0.0
  %1255 = vmatpush1.msra.mxu0 0.0
  %1256 = vmatprep.subr.mxu0 0.0
  %1257 = vmatpush1.msra.mxu0 0.0
  %1258 = vmatprep.subr.mxu0 0.0
  %1259 = vmatpush1.msra.mxu0 0.0
  %1260 = vmatprep.subr.mxu0 0.0
  %1261 = vmatpush1.msra.mxu0 0.0
  %1262 = vmatprep.subr.mxu0 0.0
  %1263 = vmatpush1.msra.mxu0 0.0
  %1264 = vmatprep.subr.mxu0 0.0
  %1265 = vmatpush1.msra.mxu0 0.0
  %1266 = vmatprep.subr.mxu0 0.0
  %1267 = vmatpush1.msra.mxu0 0.0
  %1268 = vmatprep.subr.mxu0 0.0
  %1269 = vmatpush1.msra.mxu0 0.0
  %1270 = vmatprep.subr.mxu0 0.0
  %1271 = vmatpush1.msra.mxu0 0.0
  %1272 = vmatprep.mubr.f32.mxu0 0.0
  %v1273 = vand.u32 %v169, 4294901760
  %v1274 = vsub.f32 %v169, %v1273
  %1275 = vmatmul.mubr.f32.gmra.mrb[0].mxu0 %v1274
  %v1276 = vpop.f32.mrb[0].mxu0
  %v1277 = vadd.f32 %v1173, %v1276
  %v1278 = vpop.f32.mrb[0].mxu0
  %1279 = vmatprep.mubr.f32.mxu0 0.0
  %v1280 = vand.u32 %v172, 4294901760
  %v1281 = vsub.f32 %v172, %v1280
  %1282 = vmatmul.mubr.f32.gmra.mrb[0].mxu0 %v1281
  %v1283 = vpop.f32.mrb[0].mxu0
  %v1284 = vadd.f32 %v1179, %v1283
  %v1285 = vpop.f32.mrb[0].mxu0
  %1286 = vmatprep.mubr.f32.mxu0 0.0
  %v1287 = vand.u32 %v175, 4294901760
  %v1288 = vsub.f32 %v175, %v1287
  %1289 = vmatmul.mubr.f32.gmra.mrb[0].mxu0 %v1288
  %v1290 = vpop.f32.mrb[0].mxu0
  %v1291 = vadd.f32 %v1185, %v1290
  %v1292 = vpop.f32.mrb[0].mxu0
  %1293 = vmatprep.mubr.f32.mxu0 0.0
  %v1294 = vand.u32 %v178, 4294901760
  %v1295 = vsub.f32 %v178, %v1294
  %1296 = vmatmul.mubr.f32.gmra.mrb[0].mxu0 %v1295
  %v1297 = vpop.f32.mrb[0].mxu0
  %v1298 = vadd.f32 %v1191, %v1297
  %v1299 = vpop.f32.mrb[0].mxu0
  %1300 = vdwg.mxu0
  %1301 = vmatprep.subr.mxu0 0.0
  %v1302 = vand.u32 %v144, 4294901760
  %1303 = vmatpush1.msra.mxu0 %v1302
  %1304 = vmatprep.subr.mxu0 0.0
  %v1305 = vand.u32 %v147, 4294901760
  %1306 = vmatpush1.msra.mxu0 %v1305
  %1307 = vmatprep.subr.mxu0 0.0
  %v1308 = vand.u32 %v150, 4294901760
  %1309 = vmatpush1.msra.mxu0 %v1308
  %1310 = vmatprep.subr.mxu0 0.0
  %v1311 = vand.u32 %v153, 4294901760
  %1312 = vmatpush1.msra.mxu0 %v1311
  %1313 = vmatprep.subr.mxu0 0.0
  %v1314 = vand.u32 %v156, 4294901760
  %1315 = vmatpush1.msra.mxu0 %v1314
  %1316 = vmatprep.subr.mxu0 0.0
  %v1317 = vand.u32 %v159, 4294901760
  %1318 = vmatpush1.msra.mxu0 %v1317
  %1319 = vmatprep.subr.mxu0 0.0
  %v1320 = vand.u32 %v188, 4294901760
  %1321 = vmatpush1.msra.mxu0 %v1320
  %1322 = vmatprep.subr.mxu0 0.0
  %1323 = vmatpush1.msra.mxu0 0.0
  %1324 = vmatprep.subr.mxu0 0.0
  %1325 = vmatpush1.msra.mxu0 0.0
  %1326 = vmatprep.subr.mxu0 0.0
  %1327 = vmatpush1.msra.mxu0 0.0
  %1328 = vmatprep.subr.mxu0 0.0
  %1329 = vmatpush1.msra.mxu0 0.0
  %1330 = vmatprep.subr.mxu0 0.0
  %1331 = vmatpush1.msra.mxu0 0.0
  %1332 = vmatprep.subr.mxu0 0.0
  %1333 = vmatpush1.msra.mxu0 0.0
  %1334 = vmatprep.subr.mxu0 0.0
  %1335 = vmatpush1.msra.mxu0 0.0
  %1336 = vmatprep.subr.mxu0 0.0
  %1337 = vmatpush1.msra.mxu0 0.0
  %1338 = vmatprep.subr.mxu0 0.0
  %1339 = vmatpush1.msra.mxu0 0.0
  %1340 = vmatprep.subr.mxu0 0.0
  %1341 = vmatpush1.msra.mxu0 0.0
  %1342 = vmatprep.subr.mxu0 0.0
  %1343 = vmatpush1.msra.mxu0 0.0
  %1344 = vmatprep.subr.mxu0 0.0
  %1345 = vmatpush1.msra.mxu0 0.0
  %1346 = vmatprep.subr.mxu0 0.0
  %1347 = vmatpush1.msra.mxu0 0.0
  %1348 = vmatprep.subr.mxu0 0.0
  %1349 = vmatpush1.msra.mxu0 0.0
  %1350 = vmatprep.subr.mxu0 0.0
  %1351 = vmatpush1.msra.mxu0 0.0
  %1352 = vmatprep.subr.mxu0 0.0
  %1353 = vmatpush1.msra.mxu0 0.0
  %1354 = vmatprep.subr.mxu0 0.0
  %1355 = vmatpush1.msra.mxu0 0.0
  %1356 = vmatprep.subr.mxu0 0.0
  %1357 = vmatpush1.msra.mxu0 0.0
  %1358 = vmatprep.subr.mxu0 0.0
  %1359 = vmatpush1.msra.mxu0 0.0
  %1360 = vmatprep.subr.mxu0 0.0
  %1361 = vmatpush1.msra.mxu0 0.0
  %1362 = vmatprep.subr.mxu0 0.0
  %1363 = vmatpush1.msra.mxu0 0.0
  %1364 = vmatprep.subr.mxu0 0.0
  %1365 = vmatpush1.msra.mxu0 0.0
  %1366 = vmatprep.subr.mxu0 0.0
  %1367 = vmatpush1.msra.mxu0 0.0
  %1368 = vmatprep.subr.mxu0 0.0
  %1369 = vmatpush1.msra.mxu0 0.0
  %1370 = vmatprep.subr.mxu0 0.0
  %1371 = vmatpush1.msra.mxu0 0.0
  %1372 = vmatprep.mubr.f32.mxu0 0.0
  %v1373 = vand.u32 %v169, 4294901760
  %v1374 = vsub.f32 %v169, %v1373
  %v1375 = vand.u32 %v1374, 4294901760
  %1376 = vmatmul.mubr.f32.gmra.mrb[0].mxu0 %v1375
  %v1377 = vpop.f32.mrb[0].mxu0
  %v1378 = vadd.f32 %v1277, %v1377
  %v1379 = vpop.f32.mrb[0].mxu0
  %1380 = vmatprep.mubr.f32.mxu0 0.0
  %v1381 = vand.u32 %v172, 4294901760
  %v1382 = vsub.f32 %v172, %v1381
  %v1383 = vand.u32 %v1382, 4294901760
  %1384 = vmatmul.mubr.f32.gmra.mrb[0].mxu0 %v1383
  %v1385 = vpop.f32.mrb[0].mxu0
  %v1386 = vadd.f32 %v1284, %v1385
  %v1387 = vpop.f32.mrb[0].mxu0
  %1388 = vmatprep.mubr.f32.mxu0 0.0
  %v1389 = vand.u32 %v175, 4294901760
  %v1390 = vsub.f32 %v175, %v1389
  %v1391 = vand.u32 %v1390, 4294901760
  %1392 = vmatmul.mubr.f32.gmra.mrb[0].mxu0 %v1391
  %v1393 = vpop.f32.mrb[0].mxu0
  %v1394 = vadd.f32 %v1291, %v1393
  %v1395 = vpop.f32.mrb[0].mxu0
  %1396 = vmatprep.mubr.f32.mxu0 0.0
  %v1397 = vand.u32 %v178, 4294901760
  %v1398 = vsub.f32 %v178, %v1397
  %v1399 = vand.u32 %v1398, 4294901760
  %1400 = vmatmul.mubr.f32.gmra.mrb[0].mxu0 %v1399
  %v1401 = vpop.f32.mrb[0].mxu0
  %v1402 = vadd.f32 %v1298, %v1401
  %v1403 = vpop.f32.mrb[0].mxu0
  %1404 = vdwg.mxu0
  %1405 = vmatprep.subr.mxu0 0.0
  %v1406 = vand.u32 %v144, 4294901760
  %v1407 = vsub.f32 %v144, %v1406
  %v1408 = vand.u32 %v1407, 4294901760
  %1409 = vmatpush1.msra.mxu0 %v1408
  %1410 = vmatprep.subr.mxu0 0.0
  %v1411 = vand.u32 %v147, 4294901760
  %v1412 = vsub.f32 %v147, %v1411
  %v1413 = vand.u32 %v1412, 4294901760
  %1414 = vmatpush1.msra.mxu0 %v1413
  %1415 = vmatprep.subr.mxu0 0.0
  %v1416 = vand.u32 %v150, 4294901760
  %v1417 = vsub.f32 %v150, %v1416
  %v1418 = vand.u32 %v1417, 4294901760
  %1419 = vmatpush1.msra.mxu0 %v1418
  %1420 = vmatprep.subr.mxu0 0.0
  %v1421 = vand.u32 %v153, 4294901760
  %v1422 = vsub.f32 %v153, %v1421
  %v1423 = vand.u32 %v1422, 4294901760
  %1424 = vmatpush1.msra.mxu0 %v1423
  %1425 = vmatprep.subr.mxu0 0.0
  %v1426 = vand.u32 %v156, 4294901760
  %v1427 = vsub.f32 %v156, %v1426
  %v1428 = vand.u32 %v1427, 4294901760
  %1429 = vmatpush1.msra.mxu0 %v1428
  %1430 = vmatprep.subr.mxu0 0.0
  %v1431 = vand.u32 %v159, 4294901760
  %v1432 = vsub.f32 %v159, %v1431
  %v1433 = vand.u32 %v1432, 4294901760
  %1434 = vmatpush1.msra.mxu0 %v1433
  %1435 = vmatprep.subr.mxu0 0.0
  %v1436 = vand.u32 %v188, 4294901760
  %v1437 = vsub.f32 %v188, %v1436
  %v1438 = vand.u32 %v1437, 4294901760
  %1439 = vmatpush1.msra.mxu0 %v1438
  %1440 = vmatprep.subr.mxu0 0.0
  %1441 = vmatpush1.msra.mxu0 0.0
  %1442 = vmatprep.subr.mxu0 0.0
  %1443 = vmatpush1.msra.mxu0 0.0
  %1444 = vmatprep.subr.mxu0 0.0
  %1445 = vmatpush1.msra.mxu0 0.0
  %1446 = vmatprep.subr.mxu0 0.0
  %1447 = vmatpush1.msra.mxu0 0.0
  %1448 = vmatprep.subr.mxu0 0.0
  %1449 = vmatpush1.msra.mxu0 0.0
  %1450 = vmatprep.subr.mxu0 0.0
  %1451 = vmatpush1.msra.mxu0 0.0
  %1452 = vmatprep.subr.mxu0 0.0
  %1453 = vmatpush1.msra.mxu0 0.0
  %1454 = vmatprep.subr.mxu0 0.0
  %1455 = vmatpush1.msra.mxu0 0.0
  %1456 = vmatprep.subr.mxu0 0.0
  %1457 = vmatpush1.msra.mxu0 0.0
  %1458 = vmatprep.subr.mxu0 0.0
  %1459 = vmatpush1.msra.mxu0 0.0
  %1460 = vmatprep.subr.mxu0 0.0
  %1461 = vmatpush1.msra.mxu0 0.0
  %1462 = vmatprep.subr.mxu0 0.0
  %1463 = vmatpush1.msra.mxu0 0.0
  %1464 = vmatprep.subr.mxu0 0.0
  %1465 = vmatpush1.msra.mxu0 0.0
  %1466 = vmatprep.subr.mxu0 0.0
  %1467 = vmatpush1.msra.mxu0 0.0
  %1468 = vmatprep.subr.mxu0 0.0
  %1469 = vmatpush1.msra.mxu0 0.0
  %1470 = vmatprep.subr.mxu0 0.0
  %1471 = vmatpush1.msra.mxu0 0.0
  %1472 = vmatprep.subr.mxu0 0.0
  %1473 = vmatpush1.msra.mxu0 0.0
  %1474 = vmatprep.subr.mxu0 0.0
  %1475 = vmatpush1.msra.mxu0 0.0
  %1476 = vmatprep.subr.mxu0 0.0
  %1477 = vmatpush1.msra.mxu0 0.0
  %1478 = vmatprep.subr.mxu0 0.0
  %1479 = vmatpush1.msra.mxu0 0.0
  %1480 = vmatprep.subr.mxu0 0.0
  %1481 = vmatpush1.msra.mxu0 0.0
  %1482 = vmatprep.subr.mxu0 0.0
  %1483 = vmatpush1.msra.mxu0 0.0
  %1484 = vmatprep.subr.mxu0 0.0
  %1485 = vmatpush1.msra.mxu0 0.0
  %1486 = vmatprep.subr.mxu0 0.0
  %1487 = vmatpush1.msra.mxu0 0.0
  %1488 = vmatprep.subr.mxu0 0.0
  %1489 = vmatpush1.msra.mxu0 0.0
  %1490 = vmatprep.mubr.f32.mxu0 0.0
  %v1491 = vand.u32 %v169, 4294901760
  %1492 = vmatmul.mubr.f32.gmra.mrb[0].mxu0 %v1491
  %v1493 = vpop.f32.mrb[0].mxu0
  %v1494 = vadd.f32 %v1378, %v1493
  %v1495 = vpop.f32.mrb[0].mxu0
  %1496 = vmatprep.mubr.f32.mxu0 0.0
  %v1497 = vand.u32 %v172, 4294901760
  %1498 = vmatmul.mubr.f32.gmra.mrb[0].mxu0 %v1497
  %v1499 = vpop.f32.mrb[0].mxu0
  %v1500 = vadd.f32 %v1386, %v1499
  %v1501 = vpop.f32.mrb[0].mxu0
  %1502 = vmatprep.mubr.f32.mxu0 0.0
  %v1503 = vand.u32 %v175, 4294901760
  %1504 = vmatmul.mubr.f32.gmra.mrb[0].mxu0 %v1503
  %v1505 = vpop.f32.mrb[0].mxu0
  %v1506 = vadd.f32 %v1394, %v1505
  %v1507 = vpop.f32.mrb[0].mxu0
  %1508 = vmatprep.mubr.f32.mxu0 0.0
  %v1509 = vand.u32 %v178, 4294901760
  %1510 = vmatmul.mubr.f32.gmra.mrb[0].mxu0 %v1509
  %v1511 = vpop.f32.mrb[0].mxu0
  %v1512 = vadd.f32 %v1402, %v1511
  %v1513 = vpop.f32.mrb[0].mxu0
  %1514 = vdwg.mxu0
  %1515 = vmatprep.subr.mxu0 0.0
  %v1516 = vand.u32 %v144, 4294901760
  %1517 = vmatpush1.msra.mxu0 %v1516
  %1518 = vmatprep.subr.mxu0 0.0
  %v1519 = vand.u32 %v147, 4294901760
  %1520 = vmatpush1.msra.mxu0 %v1519
  %1521 = vmatprep.subr.mxu0 0.0
  %v1522 = vand.u32 %v150, 4294901760
  %1523 = vmatpush1.msra.mxu0 %v1522
  %1524 = vmatprep.subr.mxu0 0.0
  %v1525 = vand.u32 %v153, 4294901760
  %1526 = vmatpush1.msra.mxu0 %v1525
  %1527 = vmatprep.subr.mxu0 0.0
  %v1528 = vand.u32 %v156, 4294901760
  %1529 = vmatpush1.msra.mxu0 %v1528
  %1530 = vmatprep.subr.mxu0 0.0
  %v1531 = vand.u32 %v159, 4294901760
  %1532 = vmatpush1.msra.mxu0 %v1531
  %1533 = vmatprep.subr.mxu0 0.0
  %v1534 = vand.u32 %v188, 4294901760
  %1535 = vmatpush1.msra.mxu0 %v1534
  %1536 = vmatprep.subr.mxu0 0.0
  %1537 = vmatpush1.msra.mxu0 0.0
  %1538 = vmatprep.subr.mxu0 0.0
  %1539 = vmatpush1.msra.mxu0 0.0
  %1540 = vmatprep.subr.mxu0 0.0
  %1541 = vmatpush1.msra.mxu0 0.0
  %1542 = vmatprep.subr.mxu0 0.0
  %1543 = vmatpush1.msra.mxu0 0.0
  %1544 = vmatprep.subr.mxu0 0.0
  %1545 = vmatpush1.msra.mxu0 0.0
  %1546 = vmatprep.subr.mxu0 0.0
  %1547 = vmatpush1.msra.mxu0 0.0
  %1548 = vmatprep.subr.mxu0 0.0
  %1549 = vmatpush1.msra.mxu0 0.0
  %1550 = vmatprep.subr.mxu0 0.0
  %1551 = vmatpush1.msra.mxu0 0.0
  %1552 = vmatprep.subr.mxu0 0.0
  %1553 = vmatpush1.msra.mxu0 0.0
  %1554 = vmatprep.subr.mxu0 0.0
  %1555 = vmatpush1.msra.mxu0 0.0
  %1556 = vmatprep.subr.mxu0 0.0
  %1557 = vmatpush1.msra.mxu0 0.0
  %1558 = vmatprep.subr.mxu0 0.0
  %1559 = vmatpush1.msra.mxu0 0.0
  %1560 = vmatprep.subr.mxu0 0.0
  %1561 = vmatpush1.msra.mxu0 0.0
  %1562 = vmatprep.subr.mxu0 0.0
  %1563 = vmatpush1.msra.mxu0 0.0
  %1564 = vmatprep.subr.mxu0 0.0
  %1565 = vmatpush1.msra.mxu0 0.0
  %1566 = vmatprep.subr.mxu0 0.0
  %1567 = vmatpush1.msra.mxu0 0.0
  %1568 = vmatprep.subr.mxu0 0.0
  %1569 = vmatpush1.msra.mxu0 0.0
  %1570 = vmatprep.subr.mxu0 0.0
  %1571 = vmatpush1.msra.mxu0 0.0
  %1572 = vmatprep.subr.mxu0 0.0
  %1573 = vmatpush1.msra.mxu0 0.0
  %1574 = vmatprep.subr.mxu0 0.0
  %1575 = vmatpush1.msra.mxu0 0.0
  %1576 = vmatprep.subr.mxu0 0.0
  %1577 = vmatpush1.msra.mxu0 0.0
  %1578 = vmatprep.subr.mxu0 0.0
  %1579 = vmatpush1.msra.mxu0 0.0
  %1580 = vmatprep.subr.mxu0 0.0
  %1581 = vmatpush1.msra.mxu0 0.0
  %1582 = vmatprep.subr.mxu0 0.0
  %1583 = vmatpush1.msra.mxu0 0.0
  %1584 = vmatprep.subr.mxu0 0.0
  %1585 = vmatpush1.msra.mxu0 0.0
  %1586 = vmatprep.mubr.f32.mxu0 0.0
  %v1587 = vand.u32 %v169, 4294901760
  %1588 = vmatmul.mubr.f32.gmra.mrb[0].mxu0 %v1587
  %v1589 = vpop.f32.mrb[0].mxu0
  %v1590 = vadd.f32 %v1494, %v1589
  %v1591 = vpop.f32.mrb[0].mxu0
  %1592 = vmatprep.mubr.f32.mxu0 0.0
  %v1593 = vand.u32 %v172, 4294901760
  %1594 = vmatmul.mubr.f32.gmra.mrb[0].mxu0 %v1593
  %v1595 = vpop.f32.mrb[0].mxu0
  %v1596 = vadd.f32 %v1500, %v1595
  %v1597 = vpop.f32.mrb[0].mxu0
  %1598 = vmatprep.mubr.f32.mxu0 0.0
  %v1599 = vand.u32 %v175, 4294901760
  %1600 = vmatmul.mubr.f32.gmra.mrb[0].mxu0 %v1599
  %v1601 = vpop.f32.mrb[0].mxu0
  %v1602 = vadd.f32 %v1506, %v1601
  %v1603 = vpop.f32.mrb[0].mxu0
  %1604 = vmatprep.mubr.f32.mxu0 0.0
  %v1605 = vand.u32 %v178, 4294901760
  %1606 = vmatmul.mubr.f32.gmra.mrb[0].mxu0 %v1605
  %v1607 = vpop.f32.mrb[0].mxu0
  %v1608 = vadd.f32 %v1512, %v1607
  %v1609 = vpop.f32.mrb[0].mxu0
  %1610 = vdwg.mxu0
  %1611 = vst [vmem:[%s2] sm:$0xff] %v933
  %vm1612 = vcmask 523264
  %1613 = vst.msk [vmem:[%s2 + $0x8] sm:$0xff] %vm1612, %v935
  %1614 = vst [vmem:[%s2 + $0x10] sm:$0xff] %v940
  %1615 = vst.msk [vmem:[%s2 + $0x18] sm:$0xff] %vm1612, %v942
  %1616 = vst [vmem:[%s2 + $0x20] sm:$0xff] %v947
  %1617 = vst.msk [vmem:[%s2 + $0x28] sm:$0xff] %vm1612, %v949
  %1618 = vst [vmem:[%s2 + $0x30] sm:$0xff] %v954
  %1619 = vst.msk [vmem:[%s2 + $0x38] sm:$0xff] %vm1612, %v956
  %1628 = vrot.lane.b32.xlu0 %v935, 64
  %v1629 = vpop.permute.xlu0 %1628
  %1630 = vrot.lane.b32.xlu0 %v1590, 64
  %v1631 = vpop.permute.xlu0 %1630
  %1632 = vrot.lane.b32.xlu0 %v942, 64
  %v1633 = vpop.permute.xlu0 %1632
  %1634 = vrot.lane.b32.xlu0 %v1596, 64
  %v1635 = vpop.permute.xlu0 %1634
  %1636 = vrot.lane.b32.xlu0 %v949, 64
  %v1637 = vpop.permute.xlu0 %1636
  %1638 = vrot.lane.b32.xlu0 %v1602, 64
  %v1639 = vpop.permute.xlu0 %1638
  %1640 = vrot.lane.b32.xlu0 %v956, 64
  %v1641 = vpop.permute.xlu0 %1640
  %1642 = vrot.lane.b32.xlu0 %v1608, 64
  %v1643 = vpop.permute.xlu0 %1642
  %v1644 = vsel %vm1612, %v1629, %v1631
  %v1645 = vsel %vm1612, %v1633, %v1635
  %v1646 = vsel %vm1612, %v1637, %v1639
  %v1647 = vsel %vm1612, %v1641, %v1643
  %s1656 = scalar_lea.vmem %s2, 64
  %1657 = vst [vmem:[%s1656] sm:$0xff] %v1644
  %1658 = vst.msk [vmem:[%s1656 + $0x8] sm:$0xff] %vm1612, %v1631
  %1659 = vst [vmem:[%s1656 + $0x10] sm:$0xff] %v1645
  %1660 = vst.msk [vmem:[%s1656 + $0x18] sm:$0xff] %vm1612, %v1635
  %1661 = vst [vmem:[%s1656 + $0x20] sm:$0xff] %v1646
  %1662 = vst.msk [vmem:[%s1656 + $0x28] sm:$0xff] %vm1612, %v1639
  %1663 = vst [vmem:[%s1656 + $0x30] sm:$0xff] %v1647
  %1664 = vst.msk [vmem:[%s1656 + $0x38] sm:$0xff] %vm1612, %v1643
  // Predicated region
  $region10: #{temporal_embedding.1} parent=0 // pred_check
    _
  $region11: #{temporal_embedding.1} parent=0 // pred_check_branch
    %1666 = sbr.rel (0) target = $region13
  $region12: #{temporal_embedding.1} parent=0 // pred_region
    _
  $region13: #{temporal_embedding.1} parent=0 // pred_fallthru
    _
  // Predicated region
  $region14: #{temporal_embedding.1} parent=0 // pred_check
    _
  $region15: #{temporal_embedding.1} parent=0 // pred_check_branch
    %1668 = sbr.rel (0) target = $region17
  $region16: #{temporal_embedding.1} parent=0 // pred_region
    _
  $region17: #{temporal_embedding.1} parent=0 // pred_fallthru
    _

</llo_original>
